<compile_context>
chip_gen: v6e
topology: v6e:2x2x1
jax: 0.10.0
libtpu: 0.0.40
codegen_flags: <defaults>
</compile_context>

<pallas_src>
import functools

import jax
import jax.numpy as jnp
from jax.experimental import pallas as pl
from jax.experimental.pallas import tpu as pltpu


# ------------------------------ Pallas kernel ------------------------------- #

def _fused_rgcn_kernel(*refs, num_layers, embed_first):
    # refs layout (all VMEM):
    #   x_ref  (Bt*N, Din_in)
    #   a_ref  (Bt, N, R*N)   r-major adjacency columns          [only if num_layers]
    #   ew_ref (Din, Hp), eb_ref (1, Hp)                         [only if embed_first]
    #   per layer: w_ref (K_l, (R+1)*Hp), b_ref (1, Hp)
    #   o_ref  (Bt*N, Hp)
    idx = 0
    x_ref = refs[idx]; idx += 1
    a_ref = None
    if num_layers:
        a_ref = refs[idx]; idx += 1
    if embed_first:
        ew_ref = refs[idx]
        eb_ref = refs[idx + 1]
        idx += 2
    layer_refs = []
    for _ in range(num_layers):
        layer_refs.append((refs[idx], refs[idx + 1]))
        idx += 2
    o_ref = refs[idx]

    dtype = x_ref.dtype
    x = x_ref[...]                                            # (Bt*N, Din_in)

    if embed_first:
        x = jnp.maximum(
            jnp.dot(x, ew_ref[...], preferred_element_type=jnp.float32)
            + eb_ref[...], 0.0).astype(dtype)                 # (Bt*N, Hp)

    if num_layers:
        bt, n, rn = a_ref.shape
        r = rn // n                                           # num relations

        for w_ref, b_ref in layer_refs:                       # static unroll over layers
            hp = w_ref.shape[1] // (r + 1)                    # lane-dense block width
            # (1) all relations + self-loop in ONE MXU matmul, M = Bt*N rows.
            y = jnp.dot(x, w_ref[...],
                        preferred_element_type=jnp.float32).astype(dtype)  # (Bt*N,(R+1)*Hp)
            # Self-loop contribution = last lane-aligned block (no identity matmul).
            self_msgs = y[:, r * hp:(r + 1) * hp]             # (Bt*N, Hp)
            # (2) per-graph neighbour aggregation; adjacency streamed from the ref
            #     (not hoisted across layers). Relayout (N, R*Hp) -> (R*N, Hp) is a
            #     sublane-block concat of lane-aligned slices (no masked stores).
            msgs = []
            for b in range(bt):
                yb = y[b * n:(b + 1) * n, :]
                if r == 1:
                    yprime = yb[:, :hp]
                else:
                    yprime = jnp.concatenate(
                        [yb[:, i * hp:(i + 1) * hp] for i in range(r)], axis=0)  # (R*N, Hp)
                msgs.append(jnp.dot(a_ref[b], yprime,
                                    preferred_element_type=jnp.float32))  # (N, Hp)
            nb = msgs[0] if bt == 1 else jnp.concatenate(msgs, axis=0)    # (Bt*N, Hp)
            # relu activation; dropout is identity at inference.
            x = jnp.maximum(nb + self_msgs + b_ref[...], 0.0).astype(dtype)

    o_ref[...] = x.astype(o_ref.dtype)


# --------------------------- Host-side pre-layout ---------------------------- #

def _round_up(v, m):
    return ((v + m - 1) // m) * m


def _augment_rel_weights(rel_w, loop_w, k_pad, hp):
    # rel_w (R, K, H), loop_w (K, H) -> (k_pad, (R+1)*hp):
    # r-major lane-dense column blocks, last block = self-loop weights.
    R, K, H = rel_w.shape
    w = jnp.concatenate([rel_w, loop_w[None]], axis=0)           # (R+1, K, H)
    w = jnp.pad(w, ((0, 0), (0, k_pad - K), (0, hp - H)))
    return jnp.transpose(w, (1, 0, 2)).reshape(k_pad, (R + 1) * hp)


# --------------------------------- Wrapper ----------------------------------- #

@functools.partial(jax.jit, static_argnames=("embed_first", "batch_block"))
def rgcn_encoder_forward(attn_fts, rel_edges, params, *, embed_first=True,
                         batch_block=None):
    B, N, Din = attn_fts.shape
    R = rel_edges.shape[1]
    num_layers = len(params["layers"])
    dtype = attn_fts.dtype
    itemsize = attn_fts.dtype.itemsize

    if num_layers == 0 and not embed_first:
        return attn_fts

    H = (params["layers"][0]["loop_w"].shape[1] if num_layers
         else params["embed_w"].shape[1])
    Hp = _round_up(H, 128)                     # lane-dense per-relation block width

    # ---- batch blocking: fill the MXU M dim per grid step ----------------- #
    if batch_block is None:
        batch_block = max(1, min(B, max(1, 128 // max(N, 1))))
        if N % 8:                              # keep sublane alignment for sub-blocks
            batch_block = B
    bt = batch_block
    num_blocks = (B + bt - 1) // bt
    B_pad = num_blocks * bt

    x = attn_fts
    if B_pad != B:
        x = jnp.pad(x, ((0, B_pad - B), (0, 0), (0, 0)))
    x_flat = x.reshape(B_pad * N, Din)

    inputs = [x_flat]
    in_specs = [pl.BlockSpec((bt * N, Din), lambda g: (g, 0))]
    flops = 0

    if num_layers:
        # (B, N, R*N) r-major adjacency columns; NO identity (self-loop) block.
        a = jnp.transpose(rel_edges, (0, 2, 1, 3)).reshape(B, N, R * N)
        if B_pad != B:
            a = jnp.pad(a, ((0, B_pad - B), (0, 0), (0, 0)))
        a = a.astype(dtype)
        inputs.append(a)
        in_specs.append(pl.BlockSpec((bt, N, R * N), lambda g: (g, 0, 0)))

    if embed_first:
        ew = jnp.pad(params["embed_w"], ((0, 0), (0, Hp - H))).astype(dtype)
        eb = jnp.pad(params["embed_b"], ((0, 0), (0, Hp - H))).astype(dtype)
        inputs += [ew, eb]
        in_specs += [pl.BlockSpec(ew.shape, lambda g: (0, 0)),   # grid-invariant
                     pl.BlockSpec(eb.shape, lambda g: (0, 0))]
        flops += 2 * B_pad * N * Din * Hp

    k_in = Hp if embed_first else Din
    for lp in params["layers"]:
        w_aug = _augment_rel_weights(lp["rel_w"], lp["loop_w"], k_in, Hp).astype(dtype)
        bias = jnp.pad(lp["bias"], ((0, 0), (0, Hp - H))).astype(dtype)
        inputs += [w_aug, bias]
        in_specs += [pl.BlockSpec(w_aug.shape, lambda g: (0, 0)),
                     pl.BlockSpec(bias.shape, lambda g: (0, 0))]
        flops += 2 * B_pad * N * k_in * (R + 1) * Hp          # fused weight matmul
        flops += 2 * B_pad * N * (R * N) * Hp                 # aggregation matmul
        k_in = Hp

    out_bytes = B_pad * N * Hp * itemsize
    bytes_accessed = out_bytes + sum(t.size * t.dtype.itemsize for t in inputs)

    kernel = functools.partial(_fused_rgcn_kernel,
                               num_layers=num_layers, embed_first=embed_first)

    out = pl.pallas_call(
        kernel,
        out_shape=jax.ShapeDtypeStruct((B_pad * N, Hp), dtype),   # lane-dense slab
        grid=(num_blocks,),
        in_specs=in_specs,
        out_specs=pl.BlockSpec((bt * N, Hp), lambda g: (g, 0)),
        compiler_params=pltpu.CompilerParams(
            dimension_semantics=("parallel",),
            vmem_limit_bytes=32 * 1024 * 1024),
        cost_estimate=pl.CostEstimate(flops=flops, transcendentals=0,
                                      bytes_accessed=int(bytes_accessed)),
    )(*inputs)

    # Undo the lane-dense padding / batch padding outside the kernel.
    return out.reshape(B_pad, N, Hp)[:B, :, :H]


# --------------------------- Pure-JAX reference ----------------------------- #

def rgcn_encoder_reference(attn_fts, rel_edges, params, *, embed_first=True):
    x = attn_fts
    if embed_first:
        x = jax.nn.relu(jnp.einsum("bnd,dk->bnk", x, params["embed_w"]) +
                        params["embed_b"][0])
    for lp in params["layers"]:
        self_msgs = jnp.einsum("bjd,dk->bjk", x, lp["loop_w"])
        nb = jnp.einsum("brij,bjd->bird", rel_edges, x)
        nb = jnp.einsum("bird,rdk->bik", nb, lp["rel_w"])
        x = jax.nn.relu(self_msgs + nb + lp["bias"][0])
    return x


# ------------------------------ Param init ---------------------------------- #

def init_params(key, dim_input, dim_hidden, num_rels, num_layers, embed_first=True):
    params = {"layers": []}
    keys = jax.random.split(key, 2 + 3 * num_layers)
    kidx = 0
    if embed_first:
        params["embed_w"] = (jax.random.normal(keys[kidx], (dim_input, dim_hidden),
                                               jnp.float32) * 0.1)
        kidx += 1
        params["embed_b"] = (jax.random.normal(keys[kidx], (1, dim_hidden),
                                               jnp.float32) * 0.1)
        kidx += 1
        din = dim_hidden
    else:
        din = dim_input
    for _ in range(num_layers):
        loop_w = jax.random.normal(keys[kidx], (din, dim_hidden), jnp.float32) * 0.1
        kidx += 1
        rel_w = jax.random.normal(keys[kidx], (num_rels, din, dim_hidden),
                                  jnp.float32) * 0.1
        kidx += 1
        bias = jax.random.normal(keys[kidx], (1, dim_hidden), jnp.float32) * 0.1
        kidx += 1
        params["layers"].append({"loop_w": loop_w, "rel_w": rel_w, "bias": bias})
        din = dim_hidden
    return params


# --------------------------------- Main ------------------------------------- #

if __name__ == "__main__":
    B, N, R = 2, 16, 4          # batch, num_nodes, num_rels
    DIM_INPUT, DIM_HIDDEN = 32, 32
    NUM_LAYERS = 2
    EMBED_FIRST = True

    key = jax.random.PRNGKey(0)
    k_x, k_e, k_p = jax.random.split(key, 3)

    attn_fts = jax.random.normal(k_x, (B, N, DIM_INPUT), jnp.float32)
    rel_edges = jax.random.uniform(k_e, (B, R, N, N), jnp.float32)

    params = init_params(k_p, DIM_INPUT, DIM_HIDDEN, R, NUM_LAYERS,
                         embed_first=EMBED_FIRST)

    out = rgcn_encoder_forward(attn_fts, rel_edges, params, embed_first=EMBED_FIRST)
    out = jax.block_until_ready(out)

    ref = rgcn_encoder_reference(attn_fts, rel_edges, params,
                                 embed_first=EMBED_FIRST)
    ref = jax.block_until_ready(ref)

    assert out.shape == (B, N, DIM_HIDDEN), out.shape
    # f32 tolerance: the fused kernel reassociates the relation contraction
    # (single fused weight matmul + single aggregation matmul), so bit-exactness
    # vs the einsum reference is not expected.
    assert jnp.allclose(out, ref, rtol=1e-4, atol=1e-4), \
        float(jnp.max(jnp.abs(out - ref)))

    print("KERNEL_OK")
</pallas_src>

<mosaic_0001>
module attributes {stable_mosaic.version = 11 : i64} {
  func.func @_fused_rgcn_kernel(%arg0: i32, %arg1: memref<32x32xf32, #tpu.memory_space<vmem>>, %arg2: memref<2x16x64xf32, #tpu.memory_space<vmem>>, %arg3: memref<32x128xf32, #tpu.memory_space<vmem>>, %arg4: memref<1x128xf32, #tpu.memory_space<vmem>>, %arg5: memref<128x640xf32, #tpu.memory_space<vmem>>, %arg6: memref<1x128xf32, #tpu.memory_space<vmem>>, %arg7: memref<128x640xf32, #tpu.memory_space<vmem>>, %arg8: memref<1x128xf32, #tpu.memory_space<vmem>>, %arg9: memref<32x128xf32, #tpu.memory_space<vmem>>) attributes {dimension_semantics = [#tpu.dimension_semantics<parallel>], iteration_bounds = array<i64: 1>, scalar_prefetch = 0 : i64, scratch_operands = 0 : i64, tpu.core_type = #tpu.core_type<tc>, window_params = [{transform_indices = @transform_0, window_bounds = array<i64: 32, 32>}, {transform_indices = @transform_1, window_bounds = array<i64: 2, 16, 64>}, {pipeline_mode = #tpu.pipeline_mode<synchronous>, transform_indices = @transform_2, window_bounds = array<i64: 32, 128>}, {pipeline_mode = #tpu.pipeline_mode<synchronous>, transform_indices = @transform_3, window_bounds = array<i64: 1, 128>}, {pipeline_mode = #tpu.pipeline_mode<synchronous>, transform_indices = @transform_4, window_bounds = array<i64: 128, 640>}, {pipeline_mode = #tpu.pipeline_mode<synchronous>, transform_indices = @transform_5, window_bounds = array<i64: 1, 128>}, {pipeline_mode = #tpu.pipeline_mode<synchronous>, transform_indices = @transform_6, window_bounds = array<i64: 128, 640>}, {pipeline_mode = #tpu.pipeline_mode<synchronous>, transform_indices = @transform_7, window_bounds = array<i64: 1, 128>}, {transform_indices = @transform_8, window_bounds = array<i64: 32, 128>}]} {
    %c0 = arith.constant 0 : index
    %c0_0 = arith.constant 0 : index
    %0 = vector.load %arg1[%c0, %c0_0] : memref<32x32xf32, #tpu.memory_space<vmem>>, vector<32x32xf32>
    %c0_1 = arith.constant 0 : index
    %c0_2 = arith.constant 0 : index
    %1 = vector.load %arg3[%c0_1, %c0_2] : memref<32x128xf32, #tpu.memory_space<vmem>>, vector<32x128xf32>
    %cst = arith.constant dense<0.000000e+00> : vector<32x128xf32>
    %2 = tpu.matmul %0, %1, %cst {dimension_numbers = #tpu.dot_dimension_numbers<[1], [0], [0], [1], [0, 0, 1, 1], [], []>} : vector<32x32xf32>, vector<32x128xf32>, vector<32x128xf32> -> vector<32x128xf32>
    %c0_3 = arith.constant 0 : index
    %c0_4 = arith.constant 0 : index
    %3 = vector.load %arg4[%c0_3, %c0_4] : memref<1x128xf32, #tpu.memory_space<vmem>>, vector<1x128xf32>
    %4 = vector.broadcast %3 : vector<1x128xf32> to vector<32x128xf32>
    %5 = arith.addf %2, %4 : vector<32x128xf32>
    %cst_5 = arith.constant 0.000000e+00 : f32
    %6 = vector.broadcast %cst_5 : f32 to vector<32x128xf32>
    %7 = arith.maximumf %5, %6 : vector<32x128xf32>
    %c0_6 = arith.constant 0 : index
    %c0_7 = arith.constant 0 : index
    %8 = vector.load %arg5[%c0_6, %c0_7] : memref<128x640xf32, #tpu.memory_space<vmem>>, vector<128x640xf32>
    %cst_8 = arith.constant dense<0.000000e+00> : vector<32x640xf32>
    %9 = tpu.matmul %7, %8, %cst_8 {dimension_numbers = #tpu.dot_dimension_numbers<[1], [0], [0], [1], [0, 0, 1, 1], [], []>} : vector<32x128xf32>, vector<128x640xf32>, vector<32x640xf32> -> vector<32x640xf32>
    %10 = vector.extract_strided_slice %9 {offsets = [0, 512], sizes = [32, 128], strides = [1, 1]} : vector<32x640xf32> to vector<32x128xf32>
    %11 = vector.extract_strided_slice %9 {offsets = [0, 0], sizes = [16, 640], strides = [1, 1]} : vector<32x640xf32> to vector<16x640xf32>
    %12 = vector.extract_strided_slice %11 {offsets = [0, 0], sizes = [16, 128], strides = [1, 1]} : vector<16x640xf32> to vector<16x128xf32>
    %13 = vector.extract_strided_slice %11 {offsets = [0, 128], sizes = [16, 128], strides = [1, 1]} : vector<16x640xf32> to vector<16x128xf32>
    %14 = vector.extract_strided_slice %11 {offsets = [0, 256], sizes = [16, 128], strides = [1, 1]} : vector<16x640xf32> to vector<16x128xf32>
    %15 = vector.extract_strided_slice %11 {offsets = [0, 384], sizes = [16, 128], strides = [1, 1]} : vector<16x640xf32> to vector<16x128xf32>
    %16 = tpu.concatenate %12, %13, %14, %15 in 0 : vector<16x128xf32>, vector<16x128xf32>, vector<16x128xf32>, vector<16x128xf32> -> vector<64x128xf32>
    %c0_9 = arith.constant 0 : index
    %c0_10 = arith.constant 0 : index
    %c0_11 = arith.constant 0 : index
    %17 = vector.load %arg2[%c0_9, %c0_10, %c0_11] : memref<2x16x64xf32, #tpu.memory_space<vmem>>, vector<1x16x64xf32>
    %18 = vector.shape_cast %17 : vector<1x16x64xf32> to vector<16x64xf32>
    %cst_12 = arith.constant dense<0.000000e+00> : vector<16x128xf32>
    %19 = tpu.matmul %18, %16, %cst_12 {dimension_numbers = #tpu.dot_dimension_numbers<[1], [0], [0], [1], [0, 0, 1, 1], [], []>} : vector<16x64xf32>, vector<64x128xf32>, vector<16x128xf32> -> vector<16x128xf32>
    %20 = vector.extract_strided_slice %9 {offsets = [16, 0], sizes = [16, 640], strides = [1, 1]} : vector<32x640xf32> to vector<16x640xf32>
    %21 = vector.extract_strided_slice %20 {offsets = [0, 0], sizes = [16, 128], strides = [1, 1]} : vector<16x640xf32> to vector<16x128xf32>
    %22 = vector.extract_strided_slice %20 {offsets = [0, 128], sizes = [16, 128], strides = [1, 1]} : vector<16x640xf32> to vector<16x128xf32>
    %23 = vector.extract_strided_slice %20 {offsets = [0, 256], sizes = [16, 128], strides = [1, 1]} : vector<16x640xf32> to vector<16x128xf32>
    %24 = vector.extract_strided_slice %20 {offsets = [0, 384], sizes = [16, 128], strides = [1, 1]} : vector<16x640xf32> to vector<16x128xf32>
    %25 = tpu.concatenate %21, %22, %23, %24 in 0 : vector<16x128xf32>, vector<16x128xf32>, vector<16x128xf32>, vector<16x128xf32> -> vector<64x128xf32>
    %c1 = arith.constant 1 : index
    %c0_13 = arith.constant 0 : index
    %c0_14 = arith.constant 0 : index
    %26 = vector.load %arg2[%c1, %c0_13, %c0_14] : memref<2x16x64xf32, #tpu.memory_space<vmem>>, vector<1x16x64xf32>
    %27 = vector.shape_cast %26 : vector<1x16x64xf32> to vector<16x64xf32>
    %cst_15 = arith.constant dense<0.000000e+00> : vector<16x128xf32>
    %28 = tpu.matmul %27, %25, %cst_15 {dimension_numbers = #tpu.dot_dimension_numbers<[1], [0], [0], [1], [0, 0, 1, 1], [], []>} : vector<16x64xf32>, vector<64x128xf32>, vector<16x128xf32> -> vector<16x128xf32>
    %29 = tpu.concatenate %19, %28 in 0 : vector<16x128xf32>, vector<16x128xf32> -> vector<32x128xf32>
    %30 = arith.addf %29, %10 : vector<32x128xf32>
    %c0_16 = arith.constant 0 : index
    %c0_17 = arith.constant 0 : index
    %31 = vector.load %arg6[%c0_16, %c0_17] : memref<1x128xf32, #tpu.memory_space<vmem>>, vector<1x128xf32>
    %32 = vector.broadcast %31 : vector<1x128xf32> to vector<32x128xf32>
    %33 = arith.addf %30, %32 : vector<32x128xf32>
    %cst_18 = arith.constant 0.000000e+00 : f32
    %34 = vector.broadcast %cst_18 : f32 to vector<32x128xf32>
    %35 = arith.maximumf %33, %34 : vector<32x128xf32>
    %c0_19 = arith.constant 0 : index
    %c0_20 = arith.constant 0 : index
    %36 = vector.load %arg7[%c0_19, %c0_20] : memref<128x640xf32, #tpu.memory_space<vmem>>, vector<128x640xf32>
    %cst_21 = arith.constant dense<0.000000e+00> : vector<32x640xf32>
    %37 = tpu.matmul %35, %36, %cst_21 {dimension_numbers = #tpu.dot_dimension_numbers<[1], [0], [0], [1], [0, 0, 1, 1], [], []>} : vector<32x128xf32>, vector<128x640xf32>, vector<32x640xf32> -> vector<32x640xf32>
    %38 = vector.extract_strided_slice %37 {offsets = [0, 512], sizes = [32, 128], strides = [1, 1]} : vector<32x640xf32> to vector<32x128xf32>
    %39 = vector.extract_strided_slice %37 {offsets = [0, 0], sizes = [16, 640], strides = [1, 1]} : vector<32x640xf32> to vector<16x640xf32>
    %40 = vector.extract_strided_slice %39 {offsets = [0, 0], sizes = [16, 128], strides = [1, 1]} : vector<16x640xf32> to vector<16x128xf32>
    %41 = vector.extract_strided_slice %39 {offsets = [0, 128], sizes = [16, 128], strides = [1, 1]} : vector<16x640xf32> to vector<16x128xf32>
    %42 = vector.extract_strided_slice %39 {offsets = [0, 256], sizes = [16, 128], strides = [1, 1]} : vector<16x640xf32> to vector<16x128xf32>
    %43 = vector.extract_strided_slice %39 {offsets = [0, 384], sizes = [16, 128], strides = [1, 1]} : vector<16x640xf32> to vector<16x128xf32>
    %44 = tpu.concatenate %40, %41, %42, %43 in 0 : vector<16x128xf32>, vector<16x128xf32>, vector<16x128xf32>, vector<16x128xf32> -> vector<64x128xf32>
    %c0_22 = arith.constant 0 : index
    %c0_23 = arith.constant 0 : index
    %c0_24 = arith.constant 0 : index
    %45 = vector.load %arg2[%c0_22, %c0_23, %c0_24] : memref<2x16x64xf32, #tpu.memory_space<vmem>>, vector<1x16x64xf32>
    %46 = vector.shape_cast %45 : vector<1x16x64xf32> to vector<16x64xf32>
    %cst_25 = arith.constant dense<0.000000e+00> : vector<16x128xf32>
    %47 = tpu.matmul %46, %44, %cst_25 {dimension_numbers = #tpu.dot_dimension_numbers<[1], [0], [0], [1], [0, 0, 1, 1], [], []>} : vector<16x64xf32>, vector<64x128xf32>, vector<16x128xf32> -> vector<16x128xf32>
    %48 = vector.extract_strided_slice %37 {offsets = [16, 0], sizes = [16, 640], strides = [1, 1]} : vector<32x640xf32> to vector<16x640xf32>
    %49 = vector.extract_strided_slice %48 {offsets = [0, 0], sizes = [16, 128], strides = [1, 1]} : vector<16x640xf32> to vector<16x128xf32>
    %50 = vector.extract_strided_slice %48 {offsets = [0, 128], sizes = [16, 128], strides = [1, 1]} : vector<16x640xf32> to vector<16x128xf32>
    %51 = vector.extract_strided_slice %48 {offsets = [0, 256], sizes = [16, 128], strides = [1, 1]} : vector<16x640xf32> to vector<16x128xf32>
    %52 = vector.extract_strided_slice %48 {offsets = [0, 384], sizes = [16, 128], strides = [1, 1]} : vector<16x640xf32> to vector<16x128xf32>
    %53 = tpu.concatenate %49, %50, %51, %52 in 0 : vector<16x128xf32>, vector<16x128xf32>, vector<16x128xf32>, vector<16x128xf32> -> vector<64x128xf32>
    %c1_26 = arith.constant 1 : index
    %c0_27 = arith.constant 0 : index
    %c0_28 = arith.constant 0 : index
    %54 = vector.load %arg2[%c1_26, %c0_27, %c0_28] : memref<2x16x64xf32, #tpu.memory_space<vmem>>, vector<1x16x64xf32>
    %55 = vector.shape_cast %54 : vector<1x16x64xf32> to vector<16x64xf32>
    %cst_29 = arith.constant dense<0.000000e+00> : vector<16x128xf32>
    %56 = tpu.matmul %55, %53, %cst_29 {dimension_numbers = #tpu.dot_dimension_numbers<[1], [0], [0], [1], [0, 0, 1, 1], [], []>} : vector<16x64xf32>, vector<64x128xf32>, vector<16x128xf32> -> vector<16x128xf32>
    %57 = tpu.concatenate %47, %56 in 0 : vector<16x128xf32>, vector<16x128xf32> -> vector<32x128xf32>
    %58 = arith.addf %57, %38 : vector<32x128xf32>
    %c0_30 = arith.constant 0 : index
    %c0_31 = arith.constant 0 : index
    %59 = vector.load %arg8[%c0_30, %c0_31] : memref<1x128xf32, #tpu.memory_space<vmem>>, vector<1x128xf32>
    %60 = vector.broadcast %59 : vector<1x128xf32> to vector<32x128xf32>
    %61 = arith.addf %58, %60 : vector<32x128xf32>
    %cst_32 = arith.constant 0.000000e+00 : f32
    %62 = vector.broadcast %cst_32 : f32 to vector<32x128xf32>
    %63 = arith.maximumf %61, %62 : vector<32x128xf32>
    %c0_33 = arith.constant 0 : index
    %c0_34 = arith.constant 0 : index
    %64 = vector.load %arg9[%c0_33, %c0_34] : memref<32x128xf32, #tpu.memory_space<vmem>>, vector<32x128xf32>
    tpu.vector_store %arg9[%c0_33, %c0_34], %63 {strides = array<i32>} : memref<32x128xf32, #tpu.memory_space<vmem>>, vector<32x128xf32>,
    return
  }
  func.func @transform_0(%arg0: i32) -> (i32, i32) {
    %c0_i32 = arith.constant 0 : i32
    %c0_i32_0 = arith.constant 0 : i32
    return %arg0, %c0_i32 : i32, i32
  }
  func.func @transform_1(%arg0: i32) -> (i32, i32, i32) {
    %c0_i32 = arith.constant 0 : i32
    %c0_i32_0 = arith.constant 0 : i32
    %c0_i32_1 = arith.constant 0 : i32
    return %arg0, %c0_i32, %c0_i32_0 : i32, i32, i32
  }
  func.func @transform_2(%arg0: i32) -> (i32, i32) {
    %c0_i32 = arith.constant 0 : i32
    %c0_i32_0 = arith.constant 0 : i32
    %c0_i32_1 = arith.constant 0 : i32
    return %c0_i32, %c0_i32_0 : i32, i32
  }
  func.func @transform_3(%arg0: i32) -> (i32, i32) {
    %c0_i32 = arith.constant 0 : i32
    %c0_i32_0 = arith.constant 0 : i32
    %c0_i32_1 = arith.constant 0 : i32
    return %c0_i32, %c0_i32_0 : i32, i32
  }
  func.func @transform_4(%arg0: i32) -> (i32, i32) {
    %c0_i32 = arith.constant 0 : i32
    %c0_i32_0 = arith.constant 0 : i32
    %c0_i32_1 = arith.constant 0 : i32
    return %c0_i32, %c0_i32_0 : i32, i32
  }
  func.func @transform_5(%arg0: i32) -> (i32, i32) {
    %c0_i32 = arith.constant 0 : i32
    %c0_i32_0 = arith.constant 0 : i32
    %c0_i32_1 = arith.constant 0 : i32
    return %c0_i32, %c0_i32_0 : i32, i32
  }
  func.func @transform_6(%arg0: i32) -> (i32, i32) {
    %c0_i32 = arith.constant 0 : i32
    %c0_i32_0 = arith.constant 0 : i32
    %c0_i32_1 = arith.constant 0 : i32
    return %c0_i32, %c0_i32_0 : i32, i32
  }
  func.func @transform_7(%arg0: i32) -> (i32, i32) {
    %c0_i32 = arith.constant 0 : i32
    %c0_i32_0 = arith.constant 0 : i32
    %c0_i32_1 = arith.constant 0 : i32
    return %c0_i32, %c0_i32_0 : i32, i32
  }
  func.func @transform_8(%arg0: i32) -> (i32, i32) {
    %c0_i32 = arith.constant 0 : i32
    %c0_i32_0 = arith.constant 0 : i32
    return %arg0, %c0_i32 : i32, i32
  }
}

</mosaic_0001>

<llo_original>
// kernel: rgcn_encoder_forward.1
$region0: #{rgcn_encoder_forward.1}
  #allocation0 [shape = 'u32[]', space=smem, size = 0x4, offset = 0x4, fixed_abs, tag = 'smem constant byte address 0x4 - core index']
  #allocation1 [shape = 'u32[144,128]{1,0:T(1,128)}', space=vmem, size = 0x12000, scoped, tag = 'internal scratch']
  %s0 = inlined_call_operand.vmem [shape: f32[32,32], index: 0, kind: input, shape index: {}]
  %s1 = inlined_call_operand.vmem [shape: f32[2,16,64], index: 1, kind: input, shape index: {}]
  %s2 = inlined_call_operand.vmem [shape: f32[32,128], index: 2, kind: input, shape index: {}]
  %s3 = inlined_call_operand.vmem [shape: f32[1,128], index: 3, kind: input, shape index: {}]
  %s4 = inlined_call_operand.vmem [shape: f32[128,640], index: 4, kind: input, shape index: {}]
  %s5 = inlined_call_operand.vmem [shape: f32[1,128], index: 5, kind: input, shape index: {}]
  %s6 = inlined_call_operand.vmem [shape: f32[128,640], index: 6, kind: input, shape index: {}]
  %s7 = inlined_call_operand.vmem [shape: f32[1,128], index: 7, kind: input, shape index: {}]
  %s8 = inlined_call_operand.hbm [shape: f32[32,128], index: 8, kind: output, shape index: {}]
  %s9 = sld [smem:[#allocation0]]
  $region42: #{rgcn_encoder_forward.1} parent=0
    _
  %s11 = ssub.s32 1, %s9
  %s12 = scalar_select 0, %s11, %s9
  $region1: #{rgcn_encoder_forward.1} parent=0
    #allocation2 [shape = 'u8[16384]{0}', space=vmem, size = 0x4000, scoped, tag = 'output window, operand 0, single buffered']
    #allocation3 [shape = 's32[1]{0}', space=sflag, size = 0x4, scoped, tag = 'scoped memory for rgcn_encoder_forward.1']
    %13 = vsyncpa [#allocation3], 0
    // Predicated region
    $region2: #{rgcn_encoder_forward.1} parent=1 // pred_check
      _
    $region3: #{rgcn_encoder_forward.1} parent=1 // pred_check_branch
      %15 = sbr.rel (0) target = $region5
    $region4: #{rgcn_encoder_forward.1} parent=1 // pred_region
      _
    $region5: #{rgcn_encoder_forward.1} parent=1 // pred_fallthru
      _
    // Predicated region
    $region6: #{rgcn_encoder_forward.1} parent=1 // pred_check
      _
    $region7: #{rgcn_encoder_forward.1} parent=1 // pred_check_branch
      %17 = sbr.rel (0) target = $region9
    $region8: #{rgcn_encoder_forward.1} parent=1 // pred_region
      _
    $region9: #{rgcn_encoder_forward.1} parent=1 // pred_fallthru
      _
    // Predicated region
    $region10: #{rgcn_encoder_forward.1} parent=1 // pred_check
      _
    $region11: #{rgcn_encoder_forward.1} parent=1 // pred_check_branch
      %19 = sbr.rel (0) target = $region13
    $region12: #{rgcn_encoder_forward.1} parent=1 // pred_region
      _
    $region13: #{rgcn_encoder_forward.1} parent=1 // pred_fallthru
      _
    // Predicated region
    $region14: #{rgcn_encoder_forward.1} parent=1 // pred_check
      _
    $region15: #{rgcn_encoder_forward.1} parent=1 // pred_check_branch
      %21 = sbr.rel (0) target = $region17
    $region16: #{rgcn_encoder_forward.1} parent=1 // pred_region
      _
    $region17: #{rgcn_encoder_forward.1} parent=1 // pred_fallthru
      _
    // Predicated region
    $region18: #{rgcn_encoder_forward.1} parent=1 // pred_check
      _
    $region19: #{rgcn_encoder_forward.1} parent=1 // pred_check_branch
      %23 = sbr.rel (0) target = $region21
    $region20: #{rgcn_encoder_forward.1} parent=1 // pred_region
      _
    $region21: #{rgcn_encoder_forward.1} parent=1 // pred_fallthru
      _
    // Predicated region
    $region22: #{rgcn_encoder_forward.1} parent=1 // pred_check
      _
    $region23: #{rgcn_encoder_forward.1} parent=1 // pred_check_branch
      %25 = sbr.rel (0) target = $region25
    $region24: #{rgcn_encoder_forward.1} parent=1 // pred_region
      _
    $region25: #{rgcn_encoder_forward.1} parent=1 // pred_fallthru
      _
    // Predicated region
    $region26: #{rgcn_encoder_forward.1} parent=1 // pred_check
      _
    $region27: #{rgcn_encoder_forward.1} parent=1 // pred_check_branch
      %27 = sbr.rel (0) target = $region29
    $region28: #{rgcn_encoder_forward.1} parent=1 // pred_region
      _
    $region29: #{rgcn_encoder_forward.1} parent=1 // pred_fallthru
      _
    // Predicated region
    $region30: #{rgcn_encoder_forward.1} parent=1 // pred_check
      _
    $region31: #{rgcn_encoder_forward.1} parent=1 // pred_check_branch
      %29 = sbr.rel (0) target = $region33
    $region32: #{rgcn_encoder_forward.1} parent=1 // pred_region
      _
    $region33: #{rgcn_encoder_forward.1} parent=1 // pred_fallthru
      _
    %v30 = vld [vmem:[%s0] sm:$0xff]
    %v31 = vld [vmem:[%s0 + $0x8] sm:$0xff]
    %v32 = vld [vmem:[%s0 + $0x10] sm:$0xff]
    %v33 = vld [vmem:[%s0 + $0x18] sm:$0xff]
    %v34 = vld [vmem:[%s2] sm:$0xff]
    %v35 = vld [vmem:[%s2 + $0x8] sm:$0xff]
    %v36 = vld [vmem:[%s2 + $0x10] sm:$0xff]
    %v37 = vld [vmem:[%s2 + $0x18] sm:$0xff]
    %v38 = vld [vmem:[%s3] sm:$0x1]
    %v40 = vlaneseq
    %v41 = vshrl.u32 %v40, 7
    %v42 = vsub.s32 0, %v41
    %v43 = vrot.slane %v38, %v42
    %vm45 = vcmask 261120
    %v47 = vsel %vm45, %v30, 0
    %v50 = vsel %vm45, %v31, 0
    %v53 = vsel %vm45, %v32, 0
    %v56 = vsel %vm45, %v33, 0
    %58 = vmatprep.subr.mxu0 0.0
    %59 = vmatpush1.msra.mxu0 0.0
    %60 = vmatprep.subr.mxu0 0.0
    %61 = vmatpush1.msra.mxu0 0.0
    %62 = vmatprep.subr.mxu0 0.0
    %63 = vmatpush1.msra.mxu0 0.0
    %64 = vmatprep.subr.mxu0 0.0
    %65 = vmatpush1.msra.mxu0 0.0
    %66 = vmatprep.subr.mxu0 0.0
    %67 = vmatpush1.msra.mxu0 0.0
    %68 = vmatprep.subr.mxu0 0.0
    %69 = vmatpush1.msra.mxu0 0.0
    %70 = vmatprep.subr.mxu0 0.0
    %71 = vmatpush1.msra.mxu0 0.0
    %72 = vmatprep.subr.mxu0 0.0
    %73 = vmatpush1.msra.mxu0 0.0
    %74 = vmatprep.subr.mxu0 0.0
    %75 = vmatpush1.msra.mxu0 0.0
    %76 = vmatprep.subr.mxu0 0.0
    %77 = vmatpush1.msra.mxu0 0.0
    %78 = vmatprep.subr.mxu0 0.0
    %79 = vmatpush1.msra.mxu0 0.0
    %80 = vmatprep.subr.mxu0 0.0
    %81 = vmatpush1.msra.mxu0 0.0
    %82 = vmatprep.subr.mxu0 0.0
    %83 = vmatpush1.msra.mxu0 %v37
    %84 = vmatprep.subr.mxu0 0.0
    %85 = vmatpush1.msra.mxu0 %v36
    %86 = vmatprep.subr.mxu0 0.0
    %87 = vmatpush1.msra.mxu0 %v35
    %88 = vmatprep.subr.mxu0 0.0
    %89 = vmatpush1.msra.mxu0 %v34
    %90 = vmatprep.subr.mxu0 0.0
    %91 = vmatpush2.msra.mxu0 0.0
    %92 = vmatprep.subr.mxu0 0.0
    %93 = vmatpush2.msra.mxu0 0.0
    %94 = vmatprep.subr.mxu0 0.0
    %95 = vmatpush2.msra.mxu0 0.0
    %96 = vmatprep.subr.mxu0 0.0
    %97 = vmatpush2.msra.mxu0 0.0
    %98 = vmatprep.subr.mxu0 0.0
    %99 = vmatpush2.msra.mxu0 0.0
    %100 = vmatprep.subr.mxu0 0.0
    %101 = vmatpush2.msra.mxu0 0.0
    %102 = vmatprep.subr.mxu0 0.0
    %103 = vmatpush2.msra.mxu0 0.0
    %104 = vmatprep.subr.mxu0 0.0
    %105 = vmatpush2.msra.mxu0 0.0
    %106 = vmatprep.subr.mxu0 0.0
    %107 = vmatpush2.msra.mxu0 0.0
    %108 = vmatprep.subr.mxu0 0.0
    %109 = vmatpush2.msra.mxu0 0.0
    %110 = vmatprep.subr.mxu0 0.0
    %111 = vmatpush2.msra.mxu0 0.0
    %112 = vmatprep.subr.mxu0 0.0
    %113 = vmatpush2.msra.mxu0 0.0
    %114 = vmatprep.subr.mxu0 0.0
    %115 = vmatpush2.msra.mxu0 0.0
    %116 = vmatprep.subr.mxu0 0.0
    %117 = vmatpush2.msra.mxu0 0.0
    %118 = vmatprep.subr.mxu0 0.0
    %119 = vmatpush2.msra.mxu0 0.0
    %120 = vmatprep.subr.mxu0 0.0
    %121 = vmatpush2.msra.mxu0 0.0
    %122 = vmatprep.mubr.f32.mxu0 0.0
    %123 = vmatmul.mubr.f32.gmra.mxu0 %v47
    %v124 = vpop.f32.mrf.mxu0
    %v125 = vadd.f32 %v43, %v124
    %v126 = vpop.f32.mrf.mxu0
    %127 = vmatprep.mubr.f32.mxu0 0.0
    %128 = vmatmul.mubr.f32.gmra.mxu0 %v50
    %v129 = vpop.f32.mrf.mxu0
    %v130 = vadd.f32 %v43, %v129
    %v131 = vpop.f32.mrf.mxu0
    %132 = vmatprep.mubr.f32.mxu0 0.0
    %133 = vmatmul.mubr.f32.gmra.mxu0 %v53
    %v134 = vpop.f32.mrf.mxu0
    %v135 = vadd.f32 %v43, %v134
    %v136 = vpop.f32.mrf.mxu0
    %137 = vmatprep.mubr.f32.mxu0 0.0
    %138 = vmatmul.mubr.f32.gmra.mxu0 %v56
    %v139 = vpop.f32.mrf.mxu0
    %v140 = vadd.f32 %v43, %v139
    %v141 = vpop.f32.mrf.mxu0
    %142 = vdwg.mxu0
    %v143 = vmax.f32 %v125, 0.0
    %v144 = vmax.f32 %v130, 0.0
    %v145 = vmax.f32 %v135, 0.0
    %v146 = vmax.f32 %v140, 0.0
    %v147 = vld [vmem:[%s4] sm:$0xff]
    %v148 = vld [vmem:[%s4 + $0x8] sm:$0xff]
    %v149 = vld [vmem:[%s4 + $0x10] sm:$0xff]
    %v150 = vld [vmem:[%s4 + $0x18] sm:$0xff]
    %v151 = vld [vmem:[%s4 + $0x20] sm:$0xff]
    %v152 = vld [vmem:[%s4 + $0x28] sm:$0xff]
    %v153 = vld [vmem:[%s4 + $0x30] sm:$0xff]
    %v154 = vld [vmem:[%s4 + $0x38] sm:$0xff]
    %v155 = vld [vmem:[%s4 + $0x40] sm:$0xff]
    %v156 = vld [vmem:[%s4 + $0x48] sm:$0xff]
    %v157 = vld [vmem:[%s4 + $0x50] sm:$0xff]
    %v158 = vld [vmem:[%s4 + $0x58] sm:$0xff]
    %v159 = vld [vmem:[%s4 + $0x60] sm:$0xff]
    %v160 = vld [vmem:[%s4 + $0x68] sm:$0xff]
    %v161 = vld [vmem:[%s4 + $0x70] sm:$0xff]
    %v162 = vld [vmem:[%s4 + $0x78] sm:$0xff]
    %v163 = vld [vmem:[%s4 + $0x80] sm:$0xff]
    %v164 = vld [vmem:[%s4 + $0x88] sm:$0xff]
    %v165 = vld [vmem:[%s4 + $0x90] sm:$0xff]
    %v166 = vld [vmem:[%s4 + $0x98] sm:$0xff]
    %v167 = vld [vmem:[%s4 + $0xa0] sm:$0xff]
    %v168 = vld [vmem:[%s4 + $0xa8] sm:$0xff]
    %v169 = vld [vmem:[%s4 + $0xb0] sm:$0xff]
    %v170 = vld [vmem:[%s4 + $0xb8] sm:$0xff]
    %v171 = vld [vmem:[%s4 + $0xc0] sm:$0xff]
    %v172 = vld [vmem:[%s4 + $0xc8] sm:$0xff]
    %v173 = vld [vmem:[%s4 + $0xd0] sm:$0xff]
    %v174 = vld [vmem:[%s4 + $0xd8] sm:$0xff]
    %v175 = vld [vmem:[%s4 + $0xe0] sm:$0xff]
    %v176 = vld [vmem:[%s4 + $0xe8] sm:$0xff]
    %v177 = vld [vmem:[%s4 + $0xf0] sm:$0xff]
    %v178 = vld [vmem:[%s4 + $0xf8] sm:$0xff]
    %v179 = vld [vmem:[%s4 + $0x100] sm:$0xff]
    %v180 = vld [vmem:[%s4 + $0x108] sm:$0xff]
    %v181 = vld [vmem:[%s4 + $0x110] sm:$0xff]
    %v182 = vld [vmem:[%s4 + $0x118] sm:$0xff]
    %v183 = vld [vmem:[%s4 + $0x120] sm:$0xff]
    %v184 = vld [vmem:[%s4 + $0x128] sm:$0xff]
    %v185 = vld [vmem:[%s4 + $0x130] sm:$0xff]
    %v186 = vld [vmem:[%s4 + $0x138] sm:$0xff]
    %v187 = vld [vmem:[%s4 + $0x140] sm:$0xff]
    %v188 = vld [vmem:[%s4 + $0x148] sm:$0xff]
    %v189 = vld [vmem:[%s4 + $0x150] sm:$0xff]
    %v190 = vld [vmem:[%s4 + $0x158] sm:$0xff]
    %v191 = vld [vmem:[%s4 + $0x160] sm:$0xff]
    %v192 = vld [vmem:[%s4 + $0x168] sm:$0xff]
    %v193 = vld [vmem:[%s4 + $0x170] sm:$0xff]
    %v194 = vld [vmem:[%s4 + $0x178] sm:$0xff]
    %v195 = vld [vmem:[%s4 + $0x180] sm:$0xff]
    %v196 = vld [vmem:[%s4 + $0x188] sm:$0xff]
    %v197 = vld [vmem:[%s4 + $0x190] sm:$0xff]
    %v198 = vld [vmem:[%s4 + $0x198] sm:$0xff]
    %v199 = vld [vmem:[%s4 + $0x1a0] sm:$0xff]
    %v200 = vld [vmem:[%s4 + $0x1a8] sm:$0xff]
    %v201 = vld [vmem:[%s4 + $0x1b0] sm:$0xff]
    %v202 = vld [vmem:[%s4 + $0x1b8] sm:$0xff]
    %v203 = vld [vmem:[%s4 + $0x1c0] sm:$0xff]
    %v204 = vld [vmem:[%s4 + $0x1c8] sm:$0xff]
    %v205 = vld [vmem:[%s4 + $0x1d0] sm:$0xff]
    %v206 = vld [vmem:[%s4 + $0x1d8] sm:$0xff]
    %v207 = vld [vmem:[%s4 + $0x1e0] sm:$0xff]
    %v208 = vld [vmem:[%s4 + $0x1e8] sm:$0xff]
    %v209 = vld [vmem:[%s4 + $0x1f0] sm:$0xff]
    %v210 = vld [vmem:[%s4 + $0x1f8] sm:$0xff]
    %v211 = vld [vmem:[%s4 + $0x200] sm:$0xff]
    %v212 = vld [vmem:[%s4 + $0x208] sm:$0xff]
    %v213 = vld [vmem:[%s4 + $0x210] sm:$0xff]
    %v214 = vld [vmem:[%s4 + $0x218] sm:$0xff]
    %v215 = vld [vmem:[%s4 + $0x220] sm:$0xff]
    %v216 = vld [vmem:[%s4 + $0x228] sm:$0xff]
    %v217 = vld [vmem:[%s4 + $0x230] sm:$0xff]
    %v218 = vld [vmem:[%s4 + $0x238] sm:$0xff]
    %v219 = vld [vmem:[%s4 + $0x240] sm:$0xff]
    %v220 = vld [vmem:[%s4 + $0x248] sm:$0xff]
    %v221 = vld [vmem:[%s4 + $0x250] sm:$0xff]
    %v222 = vld [vmem:[%s4 + $0x258] sm:$0xff]
    %v223 = vld [vmem:[%s4 + $0x260] sm:$0xff]
    %v224 = vld [vmem:[%s4 + $0x268] sm:$0xff]
    %v225 = vld [vmem:[%s4 + $0x270] sm:$0xff]
    %v226 = vld [vmem:[%s4 + $0x278] sm:$0xff]
    %227 = vmatprep.subr.mxu0 %v223
    %228 = vmatpush1.msra.mxu0 %v222
    %229 = vmatprep.subr.mxu0 %v218
    %230 = vmatpush1.msra.mxu0 %v217
    %231 = vmatprep.subr.mxu0 %v213
    %232 = vmatpush1.msra.mxu0 %v212
    %233 = vmatprep.subr.mxu0 %v208
    %234 = vmatpush1.msra.mxu0 %v207
    %235 = vmatprep.subr.mxu0 %v203
    %236 = vmatpush1.msra.mxu0 %v202
    %237 = vmatprep.subr.mxu0 %v198
    %238 = vmatpush1.msra.mxu0 %v197
    %239 = vmatprep.subr.mxu0 %v193
    %240 = vmatpush1.msra.mxu0 %v192
    %241 = vmatprep.subr.mxu0 %v188
    %242 = vmatpush1.msra.mxu0 %v187
    %243 = vmatprep.subr.mxu0 %v183
    %244 = vmatpush1.msra.mxu0 %v182
    %245 = vmatprep.subr.mxu0 %v178
    %246 = vmatpush1.msra.mxu0 %v177
    %247 = vmatprep.subr.mxu0 %v173
    %248 = vmatpush1.msra.mxu0 %v172
    %249 = vmatprep.subr.mxu0 %v168
    %250 = vmatpush1.msra.mxu0 %v167
    %251 = vmatprep.subr.mxu0 %v163
    %252 = vmatpush1.msra.mxu0 %v162
    %253 = vmatprep.subr.mxu0 %v158
    %254 = vmatpush1.msra.mxu0 %v157
    %255 = vmatprep.subr.mxu0 %v153
    %256 = vmatpush1.msra.mxu0 %v152
    %257 = vmatprep.subr.mxu0 %v148
    %258 = vmatpush1.msra.mxu0 %v147
    %259 = vmatprep.subr.mxu0 0.0
    %260 = vmatpush2.msra.mxu0 0.0
    %261 = vmatprep.subr.mxu0 0.0
    %262 = vmatpush2.msra.mxu0 0.0
    %263 = vmatprep.subr.mxu0 0.0
    %264 = vmatpush2.msra.mxu0 0.0
    %265 = vmatprep.subr.mxu0 0.0
    %266 = vmatpush2.msra.mxu0 0.0
    %267 = vmatprep.subr.mxu0 0.0
    %268 = vmatpush2.msra.mxu0 0.0
    %269 = vmatprep.subr.mxu0 0.0
    %270 = vmatpush2.msra.mxu0 0.0
    %271 = vmatprep.subr.mxu0 0.0
    %272 = vmatpush2.msra.mxu0 0.0
    %273 = vmatprep.subr.mxu0 0.0
    %274 = vmatpush2.msra.mxu0 0.0
    %275 = vmatprep.subr.mxu0 0.0
    %276 = vmatpush2.msra.mxu0 0.0
    %277 = vmatprep.subr.mxu0 0.0
    %278 = vmatpush2.msra.mxu0 0.0
    %279 = vmatprep.subr.mxu0 0.0
    %280 = vmatpush2.msra.mxu0 0.0
    %281 = vmatprep.subr.mxu0 0.0
    %282 = vmatpush2.msra.mxu0 0.0
    %283 = vmatprep.subr.mxu0 0.0
    %284 = vmatpush2.msra.mxu0 0.0
    %285 = vmatprep.subr.mxu0 0.0
    %286 = vmatpush2.msra.mxu0 0.0
    %287 = vmatprep.subr.mxu0 0.0
    %288 = vmatpush2.msra.mxu0 0.0
    %289 = vmatprep.subr.mxu0 0.0
    %290 = vmatpush2.msra.mxu0 0.0
    %291 = vmatprep.mubr.f32.mxu0 0.0
    %292 = vmatmul.mubr.f32.gmra.mxu0 %v143
    %v293 = vpop.f32.mrf.mxu0
    %v294 = vadd.f32 0.0, %v293
    %v295 = vpop.f32.mrf.mxu0
    %v296 = vadd.f32 0.0, %v295
    %297 = vmatprep.mubr.f32.mxu0 0.0
    %298 = vmatmul.mubr.f32.gmra.mxu0 %v144
    %v299 = vpop.f32.mrf.mxu0
    %v300 = vadd.f32 0.0, %v299
    %v301 = vpop.f32.mrf.mxu0
    %v302 = vadd.f32 0.0, %v301
    %303 = vmatprep.mubr.f32.mxu0 0.0
    %304 = vmatmul.mubr.f32.gmra.mxu0 %v145
    %v305 = vpop.f32.mrf.mxu0
    %v306 = vadd.f32 0.0, %v305
    %v307 = vpop.f32.mrf.mxu0
    %v308 = vadd.f32 0.0, %v307
    %309 = vmatprep.mubr.f32.mxu0 0.0
    %310 = vmatmul.mubr.f32.gmra.mxu0 %v146
    %v311 = vpop.f32.mrf.mxu0
    %v312 = vadd.f32 0.0, %v311
    %v313 = vpop.f32.mrf.mxu0
    %v314 = vadd.f32 0.0, %v313
    %315 = vdwg.mxu0
    %316 = vmatprep.subr.mxu0 %v225
    %317 = vmatpush1.msra.mxu0 %v224
    %318 = vmatprep.subr.mxu0 %v220
    %319 = vmatpush1.msra.mxu0 %v219
    %320 = vmatprep.subr.mxu0 %v215
    %321 = vmatpush1.msra.mxu0 %v214
    %322 = vmatprep.subr.mxu0 %v210
    %323 = vmatpush1.msra.mxu0 %v209
    %324 = vmatprep.subr.mxu0 %v205
    %325 = vmatpush1.msra.mxu0 %v204
    %326 = vmatprep.subr.mxu0 %v200
    %327 = vmatpush1.msra.mxu0 %v199
    %328 = vmatprep.subr.mxu0 %v195
    %329 = vmatpush1.msra.mxu0 %v194
    %330 = vmatprep.subr.mxu0 %v190
    %331 = vmatpush1.msra.mxu0 %v189
    %332 = vmatprep.subr.mxu0 %v185
    %333 = vmatpush1.msra.mxu0 %v184
    %334 = vmatprep.subr.mxu0 %v180
    %335 = vmatpush1.msra.mxu0 %v179
    %336 = vmatprep.subr.mxu0 %v175
    %337 = vmatpush1.msra.mxu0 %v174
    %338 = vmatprep.subr.mxu0 %v170
    %339 = vmatpush1.msra.mxu0 %v169
    %340 = vmatprep.subr.mxu0 %v165
    %341 = vmatpush1.msra.mxu0 %v164
    %342 = vmatprep.subr.mxu0 %v160
    %343 = vmatpush1.msra.mxu0 %v159
    %344 = vmatprep.subr.mxu0 %v155
    %345 = vmatpush1.msra.mxu0 %v154
    %346 = vmatprep.subr.mxu0 %v150
    %347 = vmatpush1.msra.mxu0 %v149
    %348 = vmatprep.subr.mxu0 0.0
    %349 = vmatpush2.msra.mxu0 0.0
    %350 = vmatprep.subr.mxu0 0.0
    %351 = vmatpush2.msra.mxu0 0.0
    %352 = vmatprep.subr.mxu0 0.0
    %353 = vmatpush2.msra.mxu0 0.0
    %354 = vmatprep.subr.mxu0 0.0
    %355 = vmatpush2.msra.mxu0 0.0
    %356 = vmatprep.subr.mxu0 0.0
    %357 = vmatpush2.msra.mxu0 0.0
    %358 = vmatprep.subr.mxu0 0.0
    %359 = vmatpush2.msra.mxu0 0.0
    %360 = vmatprep.subr.mxu0 0.0
    %361 = vmatpush2.msra.mxu0 0.0
    %362 = vmatprep.subr.mxu0 0.0
    %363 = vmatpush2.msra.mxu0 0.0
    %364 = vmatprep.subr.mxu0 0.0
    %365 = vmatpush2.msra.mxu0 0.0
    %366 = vmatprep.subr.mxu0 0.0
    %367 = vmatpush2.msra.mxu0 0.0
    %368 = vmatprep.subr.mxu0 0.0
    %369 = vmatpush2.msra.mxu0 0.0
    %370 = vmatprep.subr.mxu0 0.0
    %371 = vmatpush2.msra.mxu0 0.0
    %372 = vmatprep.subr.mxu0 0.0
    %373 = vmatpush2.msra.mxu0 0.0
    %374 = vmatprep.subr.mxu0 0.0
    %375 = vmatpush2.msra.mxu0 0.0
    %376 = vmatprep.subr.mxu0 0.0
    %377 = vmatpush2.msra.mxu0 0.0
    %378 = vmatprep.subr.mxu0 0.0
    %379 = vmatpush2.msra.mxu0 0.0
    %380 = vmatprep.mubr.f32.mxu0 0.0
    %381 = vmatmul.mubr.f32.gmra.mxu0 %v143
    %v382 = vpop.f32.mrf.mxu0
    %v383 = vadd.f32 0.0, %v382
    %v384 = vpop.f32.mrf.mxu0
    %v385 = vadd.f32 0.0, %v384
    %386 = vmatprep.mubr.f32.mxu0 0.0
    %387 = vmatmul.mubr.f32.gmra.mxu0 %v144
    %v388 = vpop.f32.mrf.mxu0
    %v389 = vadd.f32 0.0, %v388
    %v390 = vpop.f32.mrf.mxu0
    %v391 = vadd.f32 0.0, %v390
    %392 = vmatprep.mubr.f32.mxu0 0.0
    %393 = vmatmul.mubr.f32.gmra.mxu0 %v145
    %v394 = vpop.f32.mrf.mxu0
    %v395 = vadd.f32 0.0, %v394
    %v396 = vpop.f32.mrf.mxu0
    %v397 = vadd.f32 0.0, %v396
    %398 = vmatprep.mubr.f32.mxu0 0.0
    %399 = vmatmul.mubr.f32.gmra.mxu0 %v146
    %v400 = vpop.f32.mrf.mxu0
    %v401 = vadd.f32 0.0, %v400
    %v402 = vpop.f32.mrf.mxu0
    %v403 = vadd.f32 0.0, %v402
    %404 = vdwg.mxu0
    %405 = vmatprep.subr.mxu0 0.0
    %406 = vmatpush1.msra.mxu0 %v226
    %407 = vmatprep.subr.mxu0 0.0
    %408 = vmatpush1.msra.mxu0 %v221
    %409 = vmatprep.subr.mxu0 0.0
    %410 = vmatpush1.msra.mxu0 %v216
    %411 = vmatprep.subr.mxu0 0.0
    %412 = vmatpush1.msra.mxu0 %v211
    %413 = vmatprep.subr.mxu0 0.0
    %414 = vmatpush1.msra.mxu0 %v206
    %415 = vmatprep.subr.mxu0 0.0
    %416 = vmatpush1.msra.mxu0 %v201
    %417 = vmatprep.subr.mxu0 0.0
    %418 = vmatpush1.msra.mxu0 %v196
    %419 = vmatprep.subr.mxu0 0.0
    %420 = vmatpush1.msra.mxu0 %v191
    %421 = vmatprep.subr.mxu0 0.0
    %422 = vmatpush1.msra.mxu0 %v186
    %423 = vmatprep.subr.mxu0 0.0
    %424 = vmatpush1.msra.mxu0 %v181
    %425 = vmatprep.subr.mxu0 0.0
    %426 = vmatpush1.msra.mxu0 %v176
    %427 = vmatprep.subr.mxu0 0.0
    %428 = vmatpush1.msra.mxu0 %v171
    %429 = vmatprep.subr.mxu0 0.0
    %430 = vmatpush1.msra.mxu0 %v166
    %431 = vmatprep.subr.mxu0 0.0
    %432 = vmatpush1.msra.mxu0 %v161
    %433 = vmatprep.subr.mxu0 0.0
    %434 = vmatpush1.msra.mxu0 %v156
    %435 = vmatprep.subr.mxu0 0.0
    %436 = vmatpush1.msra.mxu0 %v151
    %437 = vmatprep.subr.mxu0 0.0
    %438 = vmatpush2.msra.mxu0 0.0
    %439 = vmatprep.subr.mxu0 0.0
    %440 = vmatpush2.msra.mxu0 0.0
    %441 = vmatprep.subr.mxu0 0.0
    %442 = vmatpush2.msra.mxu0 0.0
    %443 = vmatprep.subr.mxu0 0.0
    %444 = vmatpush2.msra.mxu0 0.0
    %445 = vmatprep.subr.mxu0 0.0
    %446 = vmatpush2.msra.mxu0 0.0
    %447 = vmatprep.subr.mxu0 0.0
    %448 = vmatpush2.msra.mxu0 0.0
    %449 = vmatprep.subr.mxu0 0.0
    %450 = vmatpush2.msra.mxu0 0.0
    %451 = vmatprep.subr.mxu0 0.0
    %452 = vmatpush2.msra.mxu0 0.0
    %453 = vmatprep.subr.mxu0 0.0
    %454 = vmatpush2.msra.mxu0 0.0
    %455 = vmatprep.subr.mxu0 0.0
    %456 = vmatpush2.msra.mxu0 0.0
    %457 = vmatprep.subr.mxu0 0.0
    %458 = vmatpush2.msra.mxu0 0.0
    %459 = vmatprep.subr.mxu0 0.0
    %460 = vmatpush2.msra.mxu0 0.0
    %461 = vmatprep.subr.mxu0 0.0
    %462 = vmatpush2.msra.mxu0 0.0
    %463 = vmatprep.subr.mxu0 0.0
    %464 = vmatpush2.msra.mxu0 0.0
    %465 = vmatprep.subr.mxu0 0.0
    %466 = vmatpush2.msra.mxu0 0.0
    %467 = vmatprep.subr.mxu0 0.0
    %468 = vmatpush2.msra.mxu0 0.0
    %469 = vmatprep.mubr.f32.mxu0 0.0
    %470 = vmatmul.mubr.f32.gmra.mxu0 %v143
    %v471 = vpop.f32.mrf.mxu0
    %v472 = vadd.f32 0.0, %v471
    %v473 = vpop.f32.mrf.mxu0
    %474 = vmatprep.mubr.f32.mxu0 0.0
    %475 = vmatmul.mubr.f32.gmra.mxu0 %v144
    %v476 = vpop.f32.mrf.mxu0
    %v477 = vadd.f32 0.0, %v476
    %v478 = vpop.f32.mrf.mxu0
    %479 = vmatprep.mubr.f32.mxu0 0.0
    %480 = vmatmul.mubr.f32.gmra.mxu0 %v145
    %v481 = vpop.f32.mrf.mxu0
    %v482 = vadd.f32 0.0, %v481
    %v483 = vpop.f32.mrf.mxu0
    %484 = vmatprep.mubr.f32.mxu0 0.0
    %485 = vmatmul.mubr.f32.gmra.mxu0 %v146
    %v486 = vpop.f32.mrf.mxu0
    %v487 = vadd.f32 0.0, %v486
    %v488 = vpop.f32.mrf.mxu0
    %489 = vdwg.mxu0
    %v490 = vld [vmem:[%s1] sm:$0xff]
    %v491 = vld [vmem:[%s1 + $0x8] sm:$0xff]
    %vm492 = vcmask 523264
    %v494 = vsel %vm492, %v490, 0
    %v497 = vsel %vm492, %v491, 0
    %499 = vmatprep.subr.mxu0 0.0
    %500 = vmatpush1.msra.mxu0 0.0
    %501 = vmatprep.subr.mxu0 0.0
    %502 = vmatpush1.msra.mxu0 0.0
    %503 = vmatprep.subr.mxu0 0.0
    %504 = vmatpush1.msra.mxu0 0.0
    %505 = vmatprep.subr.mxu0 0.0
    %506 = vmatpush1.msra.mxu0 0.0
    %507 = vmatprep.subr.mxu0 0.0
    %508 = vmatpush1.msra.mxu0 0.0
    %509 = vmatprep.subr.mxu0 0.0
    %510 = vmatpush1.msra.mxu0 0.0
    %511 = vmatprep.subr.mxu0 0.0
    %512 = vmatpush1.msra.mxu0 0.0
    %513 = vmatprep.subr.mxu0 0.0
    %514 = vmatpush1.msra.mxu0 0.0
    %515 = vmatprep.subr.mxu0 0.0
    %516 = vmatpush1.msra.mxu0 %v391
    %517 = vmatprep.subr.mxu0 0.0
    %518 = vmatpush1.msra.mxu0 %v385
    %519 = vmatprep.subr.mxu0 0.0
    %520 = vmatpush1.msra.mxu0 %v389
    %521 = vmatprep.subr.mxu0 0.0
    %522 = vmatpush1.msra.mxu0 %v383
    %523 = vmatprep.subr.mxu0 0.0
    %524 = vmatpush1.msra.mxu0 %v302
    %525 = vmatprep.subr.mxu0 0.0
    %526 = vmatpush1.msra.mxu0 %v296
    %527 = vmatprep.subr.mxu0 0.0
    %528 = vmatpush1.msra.mxu0 %v300
    %529 = vmatprep.subr.mxu0 0.0
    %530 = vmatpush1.msra.mxu0 %v294
    %531 = vmatprep.subr.mxu0 0.0
    %532 = vmatpush2.msra.mxu0 0.0
    %533 = vmatprep.subr.mxu0 0.0
    %534 = vmatpush2.msra.mxu0 0.0
    %535 = vmatprep.subr.mxu0 0.0
    %536 = vmatpush2.msra.mxu0 0.0
    %537 = vmatprep.subr.mxu0 0.0
    %538 = vmatpush2.msra.mxu0 0.0
    %539 = vmatprep.subr.mxu0 0.0
    %540 = vmatpush2.msra.mxu0 0.0
    %541 = vmatprep.subr.mxu0 0.0
    %542 = vmatpush2.msra.mxu0 0.0
    %543 = vmatprep.subr.mxu0 0.0
    %544 = vmatpush2.msra.mxu0 0.0
    %545 = vmatprep.subr.mxu0 0.0
    %546 = vmatpush2.msra.mxu0 0.0
    %547 = vmatprep.subr.mxu0 0.0
    %548 = vmatpush2.msra.mxu0 0.0
    %549 = vmatprep.subr.mxu0 0.0
    %550 = vmatpush2.msra.mxu0 0.0
    %551 = vmatprep.subr.mxu0 0.0
    %552 = vmatpush2.msra.mxu0 0.0
    %553 = vmatprep.subr.mxu0 0.0
    %554 = vmatpush2.msra.mxu0 0.0
    %555 = vmatprep.subr.mxu0 0.0
    %556 = vmatpush2.msra.mxu0 0.0
    %557 = vmatprep.subr.mxu0 0.0
    %558 = vmatpush2.msra.mxu0 0.0
    %559 = vmatprep.subr.mxu0 0.0
    %560 = vmatpush2.msra.mxu0 0.0
    %561 = vmatprep.subr.mxu0 0.0
    %562 = vmatpush2.msra.mxu0 0.0
    %563 = vmatprep.mubr.f32.mxu0 0.0
    %564 = vmatmul.mubr.f32.gmra.mxu0 %v494
    %v565 = vpop.f32.mrf.mxu0
    %v566 = vadd.f32 0.0, %v565
    %v567 = vpop.f32.mrf.mxu0
    %568 = vmatprep.mubr.f32.mxu0 0.0
    %569 = vmatmul.mubr.f32.gmra.mxu0 %v497
    %v570 = vpop.f32.mrf.mxu0
    %v571 = vadd.f32 0.0, %v570
    %v572 = vpop.f32.mrf.mxu0
    %573 = vdwg.mxu0
    %s574 = scalar_lea.vmem %s1, 16
    %v575 = vld [vmem:[%s574] sm:$0xff]
    %v576 = vld [vmem:[%s574 + $0x8] sm:$0xff]
    %v578 = vsel %vm492, %v575, 0
    %v581 = vsel %vm492, %v576, 0
    %583 = vmatprep.subr.mxu0 0.0
    %584 = vmatpush1.msra.mxu0 0.0
    %585 = vmatprep.subr.mxu0 0.0
    %586 = vmatpush1.msra.mxu0 0.0
    %587 = vmatprep.subr.mxu0 0.0
    %588 = vmatpush1.msra.mxu0 0.0
    %589 = vmatprep.subr.mxu0 0.0
    %590 = vmatpush1.msra.mxu0 0.0
    %591 = vmatprep.subr.mxu0 0.0
    %592 = vmatpush1.msra.mxu0 0.0
    %593 = vmatprep.subr.mxu0 0.0
    %594 = vmatpush1.msra.mxu0 0.0
    %595 = vmatprep.subr.mxu0 0.0
    %596 = vmatpush1.msra.mxu0 0.0
    %597 = vmatprep.subr.mxu0 0.0
    %598 = vmatpush1.msra.mxu0 0.0
    %599 = vmatprep.subr.mxu0 0.0
    %600 = vmatpush1.msra.mxu0 %v403
    %601 = vmatprep.subr.mxu0 0.0
    %602 = vmatpush1.msra.mxu0 %v397
    %603 = vmatprep.subr.mxu0 0.0
    %604 = vmatpush1.msra.mxu0 %v401
    %605 = vmatprep.subr.mxu0 0.0
    %606 = vmatpush1.msra.mxu0 %v395
    %607 = vmatprep.subr.mxu0 0.0
    %608 = vmatpush1.msra.mxu0 %v314
    %609 = vmatprep.subr.mxu0 0.0
    %610 = vmatpush1.msra.mxu0 %v308
    %611 = vmatprep.subr.mxu0 0.0
    %612 = vmatpush1.msra.mxu0 %v312
    %613 = vmatprep.subr.mxu0 0.0
    %614 = vmatpush1.msra.mxu0 %v306
    %615 = vmatprep.subr.mxu0 0.0
    %616 = vmatpush2.msra.mxu0 0.0
    %617 = vmatprep.subr.mxu0 0.0
    %618 = vmatpush2.msra.mxu0 0.0
    %619 = vmatprep.subr.mxu0 0.0
    %620 = vmatpush2.msra.mxu0 0.0
    %621 = vmatprep.subr.mxu0 0.0
    %622 = vmatpush2.msra.mxu0 0.0
    %623 = vmatprep.subr.mxu0 0.0
    %624 = vmatpush2.msra.mxu0 0.0
    %625 = vmatprep.subr.mxu0 0.0
    %626 = vmatpush2.msra.mxu0 0.0
    %627 = vmatprep.subr.mxu0 0.0
    %628 = vmatpush2.msra.mxu0 0.0
    %629 = vmatprep.subr.mxu0 0.0
    %630 = vmatpush2.msra.mxu0 0.0
    %631 = vmatprep.subr.mxu0 0.0
    %632 = vmatpush2.msra.mxu0 0.0
    %633 = vmatprep.subr.mxu0 0.0
    %634 = vmatpush2.msra.mxu0 0.0
    %635 = vmatprep.subr.mxu0 0.0
    %636 = vmatpush2.msra.mxu0 0.0
    %637 = vmatprep.subr.mxu0 0.0
    %638 = vmatpush2.msra.mxu0 0.0
    %639 = vmatprep.subr.mxu0 0.0
    %640 = vmatpush2.msra.mxu0 0.0
    %641 = vmatprep.subr.mxu0 0.0
    %642 = vmatpush2.msra.mxu0 0.0
    %643 = vmatprep.subr.mxu0 0.0
    %644 = vmatpush2.msra.mxu0 0.0
    %645 = vmatprep.subr.mxu0 0.0
    %646 = vmatpush2.msra.mxu0 0.0
    %647 = vmatprep.mubr.f32.mxu0 0.0
    %648 = vmatmul.mubr.f32.gmra.mxu0 %v578
    %v649 = vpop.f32.mrf.mxu0
    %v650 = vadd.f32 0.0, %v649
    %v651 = vpop.f32.mrf.mxu0
    %652 = vmatprep.mubr.f32.mxu0 0.0
    %653 = vmatmul.mubr.f32.gmra.mxu0 %v581
    %v654 = vpop.f32.mrf.mxu0
    %v655 = vadd.f32 0.0, %v654
    %v656 = vpop.f32.mrf.mxu0
    %657 = vdwg.mxu0
    %v658 = vadd.f32 %v566, %v472
    %v659 = vadd.f32 %v571, %v477
    %v660 = vadd.f32 %v650, %v482
    %v661 = vadd.f32 %v655, %v487
    %v662 = vld [vmem:[%s5] sm:$0x1]
    %v664 = vlaneseq
    %v665 = vshrl.u32 %v664, 7
    %v666 = vsub.s32 0, %v665
    %v667 = vrot.slane %v662, %v666
    %v669 = vadd.f32 %v658, %v667
    %v670 = vadd.f32 %v659, %v667
    %v671 = vadd.f32 %v660, %v667
    %v672 = vadd.f32 %v661, %v667
    %v673 = vmax.f32 %v669, 0.0
    %v674 = vmax.f32 %v670, 0.0
    %v675 = vmax.f32 %v671, 0.0
    %v676 = vmax.f32 %v672, 0.0
    %v677 = vld [vmem:[%s6] sm:$0xff]
    %v678 = vld [vmem:[%s6 + $0x8] sm:$0xff]
    %v679 = vld [vmem:[%s6 + $0x10] sm:$0xff]
    %v680 = vld [vmem:[%s6 + $0x18] sm:$0xff]
    %v681 = vld [vmem:[%s6 + $0x20] sm:$0xff]
    %v682 = vld [vmem:[%s6 + $0x28] sm:$0xff]
    %v683 = vld [vmem:[%s6 + $0x30] sm:$0xff]
    %v684 = vld [vmem:[%s6 + $0x38] sm:$0xff]
    %v685 = vld [vmem:[%s6 + $0x40] sm:$0xff]
    %v686 = vld [vmem:[%s6 + $0x48] sm:$0xff]
    %v687 = vld [vmem:[%s6 + $0x50] sm:$0xff]
    %v688 = vld [vmem:[%s6 + $0x58] sm:$0xff]
    %v689 = vld [vmem:[%s6 + $0x60] sm:$0xff]
    %v690 = vld [vmem:[%s6 + $0x68] sm:$0xff]
    %v691 = vld [vmem:[%s6 + $0x70] sm:$0xff]
    %v692 = vld [vmem:[%s6 + $0x78] sm:$0xff]
    %v693 = vld [vmem:[%s6 + $0x80] sm:$0xff]
    %v694 = vld [vmem:[%s6 + $0x88] sm:$0xff]
    %v695 = vld [vmem:[%s6 + $0x90] sm:$0xff]
    %v696 = vld [vmem:[%s6 + $0x98] sm:$0xff]
    %v697 = vld [vmem:[%s6 + $0xa0] sm:$0xff]
    %v698 = vld [vmem:[%s6 + $0xa8] sm:$0xff]
    %v699 = vld [vmem:[%s6 + $0xb0] sm:$0xff]
    %v700 = vld [vmem:[%s6 + $0xb8] sm:$0xff]
    %v701 = vld [vmem:[%s6 + $0xc0] sm:$0xff]
    %v702 = vld [vmem:[%s6 + $0xc8] sm:$0xff]
    %v703 = vld [vmem:[%s6 + $0xd0] sm:$0xff]
    %v704 = vld [vmem:[%s6 + $0xd8] sm:$0xff]
    %v705 = vld [vmem:[%s6 + $0xe0] sm:$0xff]
    %v706 = vld [vmem:[%s6 + $0xe8] sm:$0xff]
    %v707 = vld [vmem:[%s6 + $0xf0] sm:$0xff]
    %v708 = vld [vmem:[%s6 + $0xf8] sm:$0xff]
    %v709 = vld [vmem:[%s6 + $0x100] sm:$0xff]
    %v710 = vld [vmem:[%s6 + $0x108] sm:$0xff]
    %v711 = vld [vmem:[%s6 + $0x110] sm:$0xff]
    %v712 = vld [vmem:[%s6 + $0x118] sm:$0xff]
    %v713 = vld [vmem:[%s6 + $0x120] sm:$0xff]
    %v714 = vld [vmem:[%s6 + $0x128] sm:$0xff]
    %v715 = vld [vmem:[%s6 + $0x130] sm:$0xff]
    %v716 = vld [vmem:[%s6 + $0x138] sm:$0xff]
    %v717 = vld [vmem:[%s6 + $0x140] sm:$0xff]
    %v718 = vld [vmem:[%s6 + $0x148] sm:$0xff]
    %v719 = vld [vmem:[%s6 + $0x150] sm:$0xff]
    %v720 = vld [vmem:[%s6 + $0x158] sm:$0xff]
    %v721 = vld [vmem:[%s6 + $0x160] sm:$0xff]
    %v722 = vld [vmem:[%s6 + $0x168] sm:$0xff]
    %v723 = vld [vmem:[%s6 + $0x170] sm:$0xff]
    %v724 = vld [vmem:[%s6 + $0x178] sm:$0xff]
    %v725 = vld [vmem:[%s6 + $0x180] sm:$0xff]
    %v726 = vld [vmem:[%s6 + $0x188] sm:$0xff]
    %v727 = vld [vmem:[%s6 + $0x190] sm:$0xff]
    %v728 = vld [vmem:[%s6 + $0x198] sm:$0xff]
    %v729 = vld [vmem:[%s6 + $0x1a0] sm:$0xff]
    %v730 = vld [vmem:[%s6 + $0x1a8] sm:$0xff]
    %v731 = vld [vmem:[%s6 + $0x1b0] sm:$0xff]
    %v732 = vld [vmem:[%s6 + $0x1b8] sm:$0xff]
    %v733 = vld [vmem:[%s6 + $0x1c0] sm:$0xff]
    %v734 = vld [vmem:[%s6 + $0x1c8] sm:$0xff]
    %v735 = vld [vmem:[%s6 + $0x1d0] sm:$0xff]
    %v736 = vld [vmem:[%s6 + $0x1d8] sm:$0xff]
    %v737 = vld [vmem:[%s6 + $0x1e0] sm:$0xff]
    %v738 = vld [vmem:[%s6 + $0x1e8] sm:$0xff]
    %v739 = vld [vmem:[%s6 + $0x1f0] sm:$0xff]
    %v740 = vld [vmem:[%s6 + $0x1f8] sm:$0xff]
    %v741 = vld [vmem:[%s6 + $0x200] sm:$0xff]
    %v742 = vld [vmem:[%s6 + $0x208] sm:$0xff]
    %v743 = vld [vmem:[%s6 + $0x210] sm:$0xff]
    %v744 = vld [vmem:[%s6 + $0x218] sm:$0xff]
    %v745 = vld [vmem:[%s6 + $0x220] sm:$0xff]
    %v746 = vld [vmem:[%s6 + $0x228] sm:$0xff]
    %v747 = vld [vmem:[%s6 + $0x230] sm:$0xff]
    %v748 = vld [vmem:[%s6 + $0x238] sm:$0xff]
    %v749 = vld [vmem:[%s6 + $0x240] sm:$0xff]
    %v750 = vld [vmem:[%s6 + $0x248] sm:$0xff]
    %v751 = vld [vmem:[%s6 + $0x250] sm:$0xff]
    %v752 = vld [vmem:[%s6 + $0x258] sm:$0xff]
    %v753 = vld [vmem:[%s6 + $0x260] sm:$0xff]
    %v754 = vld [vmem:[%s6 + $0x268] sm:$0xff]
    %v755 = vld [vmem:[%s6 + $0x270] sm:$0xff]
    %v756 = vld [vmem:[%s6 + $0x278] sm:$0xff]
    %757 = vmatprep.subr.mxu0 %v753
    %758 = vmatpush1.msra.mxu0 %v752
    %759 = vmatprep.subr.mxu0 %v748
    %760 = vmatpush1.msra.mxu0 %v747
    %761 = vmatprep.subr.mxu0 %v743
    %762 = vmatpush1.msra.mxu0 %v742
    %763 = vmatprep.subr.mxu0 %v738
    %764 = vmatpush1.msra.mxu0 %v737
    %765 = vmatprep.subr.mxu0 %v733
    %766 = vmatpush1.msra.mxu0 %v732
    %767 = vmatprep.subr.mxu0 %v728
    %768 = vmatpush1.msra.mxu0 %v727
    %769 = vmatprep.subr.mxu0 %v723
    %770 = vmatpush1.msra.mxu0 %v722
    %771 = vmatprep.subr.mxu0 %v718
    %772 = vmatpush1.msra.mxu0 %v717
    %773 = vmatprep.subr.mxu0 %v713
    %774 = vmatpush1.msra.mxu0 %v712
    %775 = vmatprep.subr.mxu0 %v708
    %776 = vmatpush1.msra.mxu0 %v707
    %777 = vmatprep.subr.mxu0 %v703
    %778 = vmatpush1.msra.mxu0 %v702
    %779 = vmatprep.subr.mxu0 %v698
    %780 = vmatpush1.msra.mxu0 %v697
    %781 = vmatprep.subr.mxu0 %v693
    %782 = vmatpush1.msra.mxu0 %v692
    %783 = vmatprep.subr.mxu0 %v688
    %784 = vmatpush1.msra.mxu0 %v687
    %785 = vmatprep.subr.mxu0 %v683
    %786 = vmatpush1.msra.mxu0 %v682
    %787 = vmatprep.subr.mxu0 %v678
    %788 = vmatpush1.msra.mxu0 %v677
    %789 = vmatprep.subr.mxu0 0.0
    %790 = vmatpush2.msra.mxu0 0.0
    %791 = vmatprep.subr.mxu0 0.0
    %792 = vmatpush2.msra.mxu0 0.0
    %793 = vmatprep.subr.mxu0 0.0
    %794 = vmatpush2.msra.mxu0 0.0
    %795 = vmatprep.subr.mxu0 0.0
    %796 = vmatpush2.msra.mxu0 0.0
    %797 = vmatprep.subr.mxu0 0.0
    %798 = vmatpush2.msra.mxu0 0.0
    %799 = vmatprep.subr.mxu0 0.0
    %800 = vmatpush2.msra.mxu0 0.0
    %801 = vmatprep.subr.mxu0 0.0
    %802 = vmatpush2.msra.mxu0 0.0
    %803 = vmatprep.subr.mxu0 0.0
    %804 = vmatpush2.msra.mxu0 0.0
    %805 = vmatprep.subr.mxu0 0.0
    %806 = vmatpush2.msra.mxu0 0.0
    %807 = vmatprep.subr.mxu0 0.0
    %808 = vmatpush2.msra.mxu0 0.0
    %809 = vmatprep.subr.mxu0 0.0
    %810 = vmatpush2.msra.mxu0 0.0
    %811 = vmatprep.subr.mxu0 0.0
    %812 = vmatpush2.msra.mxu0 0.0
    %813 = vmatprep.subr.mxu0 0.0
    %814 = vmatpush2.msra.mxu0 0.0
    %815 = vmatprep.subr.mxu0 0.0
    %816 = vmatpush2.msra.mxu0 0.0
    %817 = vmatprep.subr.mxu0 0.0
    %818 = vmatpush2.msra.mxu0 0.0
    %819 = vmatprep.subr.mxu0 0.0
    %820 = vmatpush2.msra.mxu0 0.0
    %821 = vmatprep.mubr.f32.mxu0 0.0
    %822 = vmatmul.mubr.f32.gmra.mxu0 %v673
    %v823 = vpop.f32.mrf.mxu0
    %v824 = vadd.f32 0.0, %v823
    %v825 = vpop.f32.mrf.mxu0
    %v826 = vadd.f32 0.0, %v825
    %827 = vmatprep.mubr.f32.mxu0 0.0
    %828 = vmatmul.mubr.f32.gmra.mxu0 %v674
    %v829 = vpop.f32.mrf.mxu0
    %v830 = vadd.f32 0.0, %v829
    %v831 = vpop.f32.mrf.mxu0
    %v832 = vadd.f32 0.0, %v831
    %833 = vmatprep.mubr.f32.mxu0 0.0
    %834 = vmatmul.mubr.f32.gmra.mxu0 %v675
    %v835 = vpop.f32.mrf.mxu0
    %v836 = vadd.f32 0.0, %v835
    %v837 = vpop.f32.mrf.mxu0
    %v838 = vadd.f32 0.0, %v837
    %839 = vmatprep.mubr.f32.mxu0 0.0
    %840 = vmatmul.mubr.f32.gmra.mxu0 %v676
    %v841 = vpop.f32.mrf.mxu0
    %v842 = vadd.f32 0.0, %v841
    %v843 = vpop.f32.mrf.mxu0
    %v844 = vadd.f32 0.0, %v843
    %845 = vdwg.mxu0
    %846 = vmatprep.subr.mxu0 %v755
    %847 = vmatpush1.msra.mxu0 %v754
    %848 = vmatprep.subr.mxu0 %v750
    %849 = vmatpush1.msra.mxu0 %v749
    %850 = vmatprep.subr.mxu0 %v745
    %851 = vmatpush1.msra.mxu0 %v744
    %852 = vmatprep.subr.mxu0 %v740
    %853 = vmatpush1.msra.mxu0 %v739
    %854 = vmatprep.subr.mxu0 %v735
    %855 = vmatpush1.msra.mxu0 %v734
    %856 = vmatprep.subr.mxu0 %v730
    %857 = vmatpush1.msra.mxu0 %v729
    %858 = vmatprep.subr.mxu0 %v725
    %859 = vmatpush1.msra.mxu0 %v724
    %860 = vmatprep.subr.mxu0 %v720
    %861 = vmatpush1.msra.mxu0 %v719
    %862 = vmatprep.subr.mxu0 %v715
    %863 = vmatpush1.msra.mxu0 %v714
    %864 = vmatprep.subr.mxu0 %v710
    %865 = vmatpush1.msra.mxu0 %v709
    %866 = vmatprep.subr.mxu0 %v705
    %867 = vmatpush1.msra.mxu0 %v704
    %868 = vmatprep.subr.mxu0 %v700
    %869 = vmatpush1.msra.mxu0 %v699
    %870 = vmatprep.subr.mxu0 %v695
    %871 = vmatpush1.msra.mxu0 %v694
    %872 = vmatprep.subr.mxu0 %v690
    %873 = vmatpush1.msra.mxu0 %v689
    %874 = vmatprep.subr.mxu0 %v685
    %875 = vmatpush1.msra.mxu0 %v684
    %876 = vmatprep.subr.mxu0 %v680
    %877 = vmatpush1.msra.mxu0 %v679
    %878 = vmatprep.subr.mxu0 0.0
    %879 = vmatpush2.msra.mxu0 0.0
    %880 = vmatprep.subr.mxu0 0.0
    %881 = vmatpush2.msra.mxu0 0.0
    %882 = vmatprep.subr.mxu0 0.0
    %883 = vmatpush2.msra.mxu0 0.0
    %884 = vmatprep.subr.mxu0 0.0
    %885 = vmatpush2.msra.mxu0 0.0
    %886 = vmatprep.subr.mxu0 0.0
    %887 = vmatpush2.msra.mxu0 0.0
    %888 = vmatprep.subr.mxu0 0.0
    %889 = vmatpush2.msra.mxu0 0.0
    %890 = vmatprep.subr.mxu0 0.0
    %891 = vmatpush2.msra.mxu0 0.0
    %892 = vmatprep.subr.mxu0 0.0
    %893 = vmatpush2.msra.mxu0 0.0
    %894 = vmatprep.subr.mxu0 0.0
    %895 = vmatpush2.msra.mxu0 0.0
    %896 = vmatprep.subr.mxu0 0.0
    %897 = vmatpush2.msra.mxu0 0.0
    %898 = vmatprep.subr.mxu0 0.0
    %899 = vmatpush2.msra.mxu0 0.0
    %900 = vmatprep.subr.mxu0 0.0
    %901 = vmatpush2.msra.mxu0 0.0
    %902 = vmatprep.subr.mxu0 0.0
    %903 = vmatpush2.msra.mxu0 0.0
    %904 = vmatprep.subr.mxu0 0.0
    %905 = vmatpush2.msra.mxu0 0.0
    %906 = vmatprep.subr.mxu0 0.0
    %907 = vmatpush2.msra.mxu0 0.0
    %908 = vmatprep.subr.mxu0 0.0
    %909 = vmatpush2.msra.mxu0 0.0
    %910 = vmatprep.mubr.f32.mxu0 0.0
    %911 = vmatmul.mubr.f32.gmra.mxu0 %v673
    %v912 = vpop.f32.mrf.mxu0
    %v913 = vadd.f32 0.0, %v912
    %v914 = vpop.f32.mrf.mxu0
    %v915 = vadd.f32 0.0, %v914
    %916 = vmatprep.mubr.f32.mxu0 0.0
    %917 = vmatmul.mubr.f32.gmra.mxu0 %v674
    %v918 = vpop.f32.mrf.mxu0
    %v919 = vadd.f32 0.0, %v918
    %v920 = vpop.f32.mrf.mxu0
    %v921 = vadd.f32 0.0, %v920
    %922 = vmatprep.mubr.f32.mxu0 0.0
    %923 = vmatmul.mubr.f32.gmra.mxu0 %v675
    %v924 = vpop.f32.mrf.mxu0
    %v925 = vadd.f32 0.0, %v924
    %v926 = vpop.f32.mrf.mxu0
    %v927 = vadd.f32 0.0, %v926
    %928 = vmatprep.mubr.f32.mxu0 0.0
    %929 = vmatmul.mubr.f32.gmra.mxu0 %v676
    %v930 = vpop.f32.mrf.mxu0
    %v931 = vadd.f32 0.0, %v930
    %v932 = vpop.f32.mrf.mxu0
    %v933 = vadd.f32 0.0, %v932
    %934 = vdwg.mxu0
    %935 = vmatprep.subr.mxu0 0.0
    %936 = vmatpush1.msra.mxu0 %v756
    %937 = vmatprep.subr.mxu0 0.0
    %938 = vmatpush1.msra.mxu0 %v751
    %939 = vmatprep.subr.mxu0 0.0
    %940 = vmatpush1.msra.mxu0 %v746
    %941 = vmatprep.subr.mxu0 0.0
    %942 = vmatpush1.msra.mxu0 %v741
    %943 = vmatprep.subr.mxu0 0.0
    %944 = vmatpush1.msra.mxu0 %v736
    %945 = vmatprep.subr.mxu0 0.0
    %946 = vmatpush1.msra.mxu0 %v731
    %947 = vmatprep.subr.mxu0 0.0
    %948 = vmatpush1.msra.mxu0 %v726
    %949 = vmatprep.subr.mxu0 0.0
    %950 = vmatpush1.msra.mxu0 %v721
    %951 = vmatprep.subr.mxu0 0.0
    %952 = vmatpush1.msra.mxu0 %v716
    %953 = vmatprep.subr.mxu0 0.0
    %954 = vmatpush1.msra.mxu0 %v711
    %955 = vmatprep.subr.mxu0 0.0
    %956 = vmatpush1.msra.mxu0 %v706
    %957 = vmatprep.subr.mxu0 0.0
    %958 = vmatpush1.msra.mxu0 %v701
    %959 = vmatprep.subr.mxu0 0.0
    %960 = vmatpush1.msra.mxu0 %v696
    %961 = vmatprep.subr.mxu0 0.0
    %962 = vmatpush1.msra.mxu0 %v691
    %963 = vmatprep.subr.mxu0 0.0
    %964 = vmatpush1.msra.mxu0 %v686
    %965 = vmatprep.subr.mxu0 0.0
    %966 = vmatpush1.msra.mxu0 %v681
    %967 = vmatprep.subr.mxu0 0.0
    %968 = vmatpush2.msra.mxu0 0.0
    %969 = vmatprep.subr.mxu0 0.0
    %970 = vmatpush2.msra.mxu0 0.0
    %971 = vmatprep.subr.mxu0 0.0
    %972 = vmatpush2.msra.mxu0 0.0
    %973 = vmatprep.subr.mxu0 0.0
    %974 = vmatpush2.msra.mxu0 0.0
    %975 = vmatprep.subr.mxu0 0.0
    %976 = vmatpush2.msra.mxu0 0.0
    %977 = vmatprep.subr.mxu0 0.0
    %978 = vmatpush2.msra.mxu0 0.0
    %979 = vmatprep.subr.mxu0 0.0
    %980 = vmatpush2.msra.mxu0 0.0
    %981 = vmatprep.subr.mxu0 0.0
    %982 = vmatpush2.msra.mxu0 0.0
    %983 = vmatprep.subr.mxu0 0.0
    %984 = vmatpush2.msra.mxu0 0.0
    %985 = vmatprep.subr.mxu0 0.0
    %986 = vmatpush2.msra.mxu0 0.0
    %987 = vmatprep.subr.mxu0 0.0
    %988 = vmatpush2.msra.mxu0 0.0
    %989 = vmatprep.subr.mxu0 0.0
    %990 = vmatpush2.msra.mxu0 0.0
    %991 = vmatprep.subr.mxu0 0.0
    %992 = vmatpush2.msra.mxu0 0.0
    %993 = vmatprep.subr.mxu0 0.0
    %994 = vmatpush2.msra.mxu0 0.0
    %995 = vmatprep.subr.mxu0 0.0
    %996 = vmatpush2.msra.mxu0 0.0
    %997 = vmatprep.subr.mxu0 0.0
    %998 = vmatpush2.msra.mxu0 0.0
    %999 = vmatprep.mubr.f32.mxu0 0.0
    %1000 = vmatmul.mubr.f32.gmra.mxu0 %v673
    %v1001 = vpop.f32.mrf.mxu0
    %v1002 = vadd.f32 0.0, %v1001
    %v1003 = vpop.f32.mrf.mxu0
    %1004 = vmatprep.mubr.f32.mxu0 0.0
    %1005 = vmatmul.mubr.f32.gmra.mxu0 %v674
    %v1006 = vpop.f32.mrf.mxu0
    %v1007 = vadd.f32 0.0, %v1006
    %v1008 = vpop.f32.mrf.mxu0
    %1009 = vmatprep.mubr.f32.mxu0 0.0
    %1010 = vmatmul.mubr.f32.gmra.mxu0 %v675
    %v1011 = vpop.f32.mrf.mxu0
    %v1012 = vadd.f32 0.0, %v1011
    %v1013 = vpop.f32.mrf.mxu0
    %1014 = vmatprep.mubr.f32.mxu0 0.0
    %1015 = vmatmul.mubr.f32.gmra.mxu0 %v676
    %v1016 = vpop.f32.mrf.mxu0
    %v1017 = vadd.f32 0.0, %v1016
    %v1018 = vpop.f32.mrf.mxu0
    %1019 = vdwg.mxu0
    %1020 = vmatprep.subr.mxu0 0.0
    %1021 = vmatpush1.msra.mxu0 0.0
    %1022 = vmatprep.subr.mxu0 0.0
    %1023 = vmatpush1.msra.mxu0 0.0
    %1024 = vmatprep.subr.mxu0 0.0
    %1025 = vmatpush1.msra.mxu0 0.0
    %1026 = vmatprep.subr.mxu0 0.0
    %1027 = vmatpush1.msra.mxu0 0.0
    %1028 = vmatprep.subr.mxu0 0.0
    %1029 = vmatpush1.msra.mxu0 0.0
    %1030 = vmatprep.subr.mxu0 0.0
    %1031 = vmatpush1.msra.mxu0 0.0
    %1032 = vmatprep.subr.mxu0 0.0
    %1033 = vmatpush1.msra.mxu0 0.0
    %1034 = vmatprep.subr.mxu0 0.0
    %1035 = vmatpush1.msra.mxu0 0.0
    %1036 = vmatprep.subr.mxu0 0.0
    %1037 = vmatpush1.msra.mxu0 %v921
    %1038 = vmatprep.subr.mxu0 0.0
    %1039 = vmatpush1.msra.mxu0 %v915
    %1040 = vmatprep.subr.mxu0 0.0
    %1041 = vmatpush1.msra.mxu0 %v919
    %1042 = vmatprep.subr.mxu0 0.0
    %1043 = vmatpush1.msra.mxu0 %v913
    %1044 = vmatprep.subr.mxu0 0.0
    %1045 = vmatpush1.msra.mxu0 %v832
    %1046 = vmatprep.subr.mxu0 0.0
    %1047 = vmatpush1.msra.mxu0 %v826
    %1048 = vmatprep.subr.mxu0 0.0
    %1049 = vmatpush1.msra.mxu0 %v830
    %1050 = vmatprep.subr.mxu0 0.0
    %1051 = vmatpush1.msra.mxu0 %v824
    %1052 = vmatprep.subr.mxu0 0.0
    %1053 = vmatpush2.msra.mxu0 0.0
    %1054 = vmatprep.subr.mxu0 0.0
    %1055 = vmatpush2.msra.mxu0 0.0
    %1056 = vmatprep.subr.mxu0 0.0
    %1057 = vmatpush2.msra.mxu0 0.0
    %1058 = vmatprep.subr.mxu0 0.0
    %1059 = vmatpush2.msra.mxu0 0.0
    %1060 = vmatprep.subr.mxu0 0.0
    %1061 = vmatpush2.msra.mxu0 0.0
    %1062 = vmatprep.subr.mxu0 0.0
    %1063 = vmatpush2.msra.mxu0 0.0
    %1064 = vmatprep.subr.mxu0 0.0
    %1065 = vmatpush2.msra.mxu0 0.0
    %1066 = vmatprep.subr.mxu0 0.0
    %1067 = vmatpush2.msra.mxu0 0.0
    %1068 = vmatprep.subr.mxu0 0.0
    %1069 = vmatpush2.msra.mxu0 0.0
    %1070 = vmatprep.subr.mxu0 0.0
    %1071 = vmatpush2.msra.mxu0 0.0
    %1072 = vmatprep.subr.mxu0 0.0
    %1073 = vmatpush2.msra.mxu0 0.0
    %1074 = vmatprep.subr.mxu0 0.0
    %1075 = vmatpush2.msra.mxu0 0.0
    %1076 = vmatprep.subr.mxu0 0.0
    %1077 = vmatpush2.msra.mxu0 0.0
    %1078 = vmatprep.subr.mxu0 0.0
    %1079 = vmatpush2.msra.mxu0 0.0
    %1080 = vmatprep.subr.mxu0 0.0
    %1081 = vmatpush2.msra.mxu0 0.0
    %1082 = vmatprep.subr.mxu0 0.0
    %1083 = vmatpush2.msra.mxu0 0.0
    %1084 = vmatprep.mubr.f32.mxu0 0.0
    %1085 = vmatmul.mubr.f32.gmra.mxu0 %v494
    %v1086 = vpop.f32.mrf.mxu0
    %v1087 = vadd.f32 0.0, %v1086
    %v1088 = vpop.f32.mrf.mxu0
    %1089 = vmatprep.mubr.f32.mxu0 0.0
    %1090 = vmatmul.mubr.f32.gmra.mxu0 %v497
    %v1091 = vpop.f32.mrf.mxu0
    %v1092 = vadd.f32 0.0, %v1091
    %v1093 = vpop.f32.mrf.mxu0
    %1094 = vdwg.mxu0
    %1095 = vmatprep.subr.mxu0 0.0
    %1096 = vmatpush1.msra.mxu0 0.0
    %1097 = vmatprep.subr.mxu0 0.0
    %1098 = vmatpush1.msra.mxu0 0.0
    %1099 = vmatprep.subr.mxu0 0.0
    %1100 = vmatpush1.msra.mxu0 0.0
    %1101 = vmatprep.subr.mxu0 0.0
    %1102 = vmatpush1.msra.mxu0 0.0
    %1103 = vmatprep.subr.mxu0 0.0
    %1104 = vmatpush1.msra.mxu0 0.0
    %1105 = vmatprep.subr.mxu0 0.0
    %1106 = vmatpush1.msra.mxu0 0.0
    %1107 = vmatprep.subr.mxu0 0.0
    %1108 = vmatpush1.msra.mxu0 0.0
    %1109 = vmatprep.subr.mxu0 0.0
    %1110 = vmatpush1.msra.mxu0 0.0
    %1111 = vmatprep.subr.mxu0 0.0
    %1112 = vmatpush1.msra.mxu0 %v933
    %1113 = vmatprep.subr.mxu0 0.0
    %1114 = vmatpush1.msra.mxu0 %v927
    %1115 = vmatprep.subr.mxu0 0.0
    %1116 = vmatpush1.msra.mxu0 %v931
    %1117 = vmatprep.subr.mxu0 0.0
    %1118 = vmatpush1.msra.mxu0 %v925
    %1119 = vmatprep.subr.mxu0 0.0
    %1120 = vmatpush1.msra.mxu0 %v844
    %1121 = vmatprep.subr.mxu0 0.0
    %1122 = vmatpush1.msra.mxu0 %v838
    %1123 = vmatprep.subr.mxu0 0.0
    %1124 = vmatpush1.msra.mxu0 %v842
    %1125 = vmatprep.subr.mxu0 0.0
    %1126 = vmatpush1.msra.mxu0 %v836
    %1127 = vmatprep.subr.mxu0 0.0
    %1128 = vmatpush2.msra.mxu0 0.0
    %1129 = vmatprep.subr.mxu0 0.0
    %1130 = vmatpush2.msra.mxu0 0.0
    %1131 = vmatprep.subr.mxu0 0.0
    %1132 = vmatpush2.msra.mxu0 0.0
    %1133 = vmatprep.subr.mxu0 0.0
    %1134 = vmatpush2.msra.mxu0 0.0
    %1135 = vmatprep.subr.mxu0 0.0
    %1136 = vmatpush2.msra.mxu0 0.0
    %1137 = vmatprep.subr.mxu0 0.0
    %1138 = vmatpush2.msra.mxu0 0.0
    %1139 = vmatprep.subr.mxu0 0.0
    %1140 = vmatpush2.msra.mxu0 0.0
    %1141 = vmatprep.subr.mxu0 0.0
    %1142 = vmatpush2.msra.mxu0 0.0
    %1143 = vmatprep.subr.mxu0 0.0
    %1144 = vmatpush2.msra.mxu0 0.0
    %1145 = vmatprep.subr.mxu0 0.0
    %1146 = vmatpush2.msra.mxu0 0.0
    %1147 = vmatprep.subr.mxu0 0.0
    %1148 = vmatpush2.msra.mxu0 0.0
    %1149 = vmatprep.subr.mxu0 0.0
    %1150 = vmatpush2.msra.mxu0 0.0
    %1151 = vmatprep.subr.mxu0 0.0
    %1152 = vmatpush2.msra.mxu0 0.0
    %1153 = vmatprep.subr.mxu0 0.0
    %1154 = vmatpush2.msra.mxu0 0.0
    %1155 = vmatprep.subr.mxu0 0.0
    %1156 = vmatpush2.msra.mxu0 0.0
    %1157 = vmatprep.subr.mxu0 0.0
    %1158 = vmatpush2.msra.mxu0 0.0
    %1159 = vmatprep.mubr.f32.mxu0 0.0
    %1160 = vmatmul.mubr.f32.gmra.mxu0 %v578
    %v1161 = vpop.f32.mrf.mxu0
    %v1162 = vadd.f32 0.0, %v1161
    %v1163 = vpop.f32.mrf.mxu0
    %1164 = vmatprep.mubr.f32.mxu0 0.0
    %1165 = vmatmul.mubr.f32.gmra.mxu0 %v581
    %v1166 = vpop.f32.mrf.mxu0
    %v1167 = vadd.f32 0.0, %v1166
    %v1168 = vpop.f32.mrf.mxu0
    %1169 = vdwg.mxu0
    %v1170 = vadd.f32 %v1087, %v1002
    %v1171 = vadd.f32 %v1092, %v1007
    %v1172 = vadd.f32 %v1162, %v1012
    %v1173 = vadd.f32 %v1167, %v1017
    %v1174 = vld [vmem:[%s7] sm:$0x1]
    %v1176 = vlaneseq
    %v1177 = vshrl.u32 %v1176, 7
    %v1178 = vsub.s32 0, %v1177
    %v1179 = vrot.slane %v1174, %v1178
    %v1181 = vadd.f32 %v1170, %v1179
    %v1182 = vadd.f32 %v1171, %v1179
    %v1183 = vadd.f32 %v1172, %v1179
    %v1184 = vadd.f32 %v1173, %v1179
    %v1185 = vmax.f32 %v1181, 0.0
    %v1186 = vmax.f32 %v1182, 0.0
    %v1187 = vmax.f32 %v1183, 0.0
    %v1188 = vmax.f32 %v1184, 0.0
    %1189 = vst [vmem:[#allocation2] sm:$0xff] %v1185
    %1190 = vst [vmem:[#allocation2 + $0x8] sm:$0xff] %v1186
    %1191 = vst [vmem:[#allocation2 + $0x10] sm:$0xff] %v1187
    %1192 = vst [vmem:[#allocation2 + $0x18] sm:$0xff] %v1188
    // Predicated region
    $region34: #{rgcn_encoder_forward.1} parent=1 // pred_check
      _
    $region35: #{rgcn_encoder_forward.1} parent=1 // pred_check_branch
      %1194 = sbr.rel (0) target = $region37
    $region36: #{rgcn_encoder_forward.1} parent=1 // pred_region
      %s1196 = ssub.s32 512, 512
      %1197 = vsyncadd [#allocation3], %s1196
      %s1198 = sshll.u32 [#allocation2], 4
      %s1199 = int_to_ptr.vmem [resolvable:$true] %s1198
      %1204 = dma.vmem_to_hbm [thread:$0]  %s1199, 512, %s8, [#allocation3], 128, 128, 8
    $region37: #{rgcn_encoder_forward.1} parent=1 // pred_fallthru
      _
    // Predicated region
    $region38: #{rgcn_encoder_forward.1} parent=1 // pred_check
      _
    $region39: #{rgcn_encoder_forward.1} parent=1 // pred_check_branch
      %1206 = sbr.rel (0) target = $region41
    $region40: #{rgcn_encoder_forward.1} parent=1 // pred_region
      %1207 = dma.done [#allocation3], 512
    $region41: #{rgcn_encoder_forward.1} parent=1 // pred_fallthru
      _
    %1208 = vsyncpa [#allocation3], 1

</llo_original>
